<compile_context>
chip_gen: v5e
topology: v5e:2x2
jax: 0.10.0
libtpu: 0.0.40
codegen_flags: <defaults>
</compile_context>

<pallas_src>
import functools

import jax
import jax.numpy as jnp
from jax import lax
from jax.experimental import pallas as pl
from jax.experimental.pallas import tpu as pltpu


LANE = 128


def _round_up(v, m=LANE):
    return ((v + m - 1) // m) * m


def _pad_last(a, target):
    return jnp.pad(a, [(0, 0)] * (a.ndim - 1) + [(0, target - a.shape[-1])])


def _pick_band(n, target=8):
    """Largest divisor of n that is <= target (row-band height)."""
    for b in range(min(target, n), 0, -1):
        if n % b == 0:
            return b
    return 1


# ----------------------------------------------------------------------------
# Fused kernel factory: expand(1x1) + depthwise(3x3) + project(1x1) (+residual)
# One grid step = one image; everything stays in VMEM between stages.
# ----------------------------------------------------------------------------
def _make_fused_kernel(*, H, W, Ho, Wo, stride, Cin_p, Ch_p, Cout_p,
                       has_expand, use_res, bh_in, nb_in, bh_out, nb_out):
    def kernel(*refs):
        if has_expand:
            (x_ref, w_exp_ref, b_exp_ref,
             w_dw_ref, b_dw_ref,
             w_proj_ref, b_proj_ref,
             o_ref, pad_ref) = refs
        else:
            (x_ref,
             w_dw_ref, b_dw_ref,
             w_proj_ref, b_proj_ref,
             o_ref, pad_ref) = refs

        # ---- zero ONLY the 1-pixel halo border (interior overwritten below).
        # Done every step (not once under program_id==0) so the kernel stays
        # correct when the "parallel" batch axis is split across TensorCores.
        zrow = jnp.zeros((1, W + 2, Ch_p), jnp.float32)
        zcol = jnp.zeros((H + 2, 1, Ch_p), jnp.float32)
        pad_ref[pl.ds(0, 1), pl.ds(0, W + 2), :] = zrow
        pad_ref[pl.ds(H + 1, 1), pl.ds(0, W + 2), :] = zrow
        pad_ref[pl.ds(0, H + 2), pl.ds(0, 1), :] = zcol
        pad_ref[pl.ds(0, H + 2), pl.ds(W + 1, 1), :] = zcol

        # ---- stage 1: expand 1x1 (bf16 MXU, scale-folded) + bias + ReLU6 ----
        # Row-banded so the hidden activation never lives whole-image in vregs.
        def expand_band(b, carry):
            r0 = pl.multiple_of(b * bh_in, bh_in)
            xb = x_ref[pl.ds(r0, bh_in), :, :]              # (bh_in, W, Cin_p)
            if has_expand:
                xm = xb.reshape(bh_in * W, Cin_p).astype(jnp.bfloat16)
                h = jnp.dot(xm, w_exp_ref[...],
                            preferred_element_type=jnp.float32)
                h = jnp.clip(h + b_exp_ref[...], 0.0, 6.0)
                hb = h.reshape(bh_in, W, Ch_p)
            else:                                            # Ch_p == Cin_p
                hb = xb.astype(jnp.float32)
            pad_ref[pl.ds(r0 + 1, bh_in), pl.ds(1, W), :] = hb
            return carry

        lax.fori_loop(0, nb_in, expand_band, 0)

        # ---- stage 2+3: depthwise 3x3 + bias + ReLU6 -> project 1x1 (+res) --
        def out_band(b, carry):
            r0 = pl.multiple_of(b * bh_out, bh_out)
            acc = jnp.zeros((bh_out, Wo, Ch_p), jnp.float32)
            for dh in range(3):                              # static 9-tap unroll
                for dw in range(3):
                    if stride == 1:
                        patch = pad_ref[pl.ds(r0 + dh, bh_out),
                                        pl.ds(dw, Wo), :]
                    else:                                    # stride folded in taps
                        patch = pad_ref[pl.ds(r0 * stride + dh, bh_out, stride),
                                        pl.ds(dw, Wo, stride), :]
                    acc = acc + patch * w_dw_ref[dh * 3 + dw]
            d = jnp.clip(acc + b_dw_ref[...], 0.0, 6.0)
            dm = d.reshape(bh_out * Wo, Ch_p).astype(jnp.bfloat16)
            y = jnp.dot(dm, w_proj_ref[...],
                        preferred_element_type=jnp.float32)
            y = y + b_proj_ref[...]
            if use_res:          # stride==1 -> Ho==H, Wo==W, Cin_p==Cout_p
                xr = x_ref[pl.ds(r0, bh_out), :, :].reshape(bh_out * W, Cin_p)
                y = y + xr.astype(jnp.float32)
            o_ref[pl.ds(r0, bh_out), :, :] = (
                y.reshape(bh_out, Wo, Cout_p).astype(o_ref.dtype))
            return carry

        lax.fori_loop(0, nb_out, out_band, 0)

    return kernel


# ----------------------------------------------------------------------------
# Parameters (deterministic, synthetic, PyTorch-layout-equivalent) + BN folding
# ----------------------------------------------------------------------------
def _folded_bn(key, c):
    k1, k2, k3, k4 = jax.random.split(key, 4)
    gamma = jax.random.uniform(k1, (c,), jnp.float32, 0.5, 1.5)
    beta = 0.1 * jax.random.normal(k2, (c,), jnp.float32)
    mean = 0.1 * jax.random.normal(k3, (c,), jnp.float32)
    var = jax.random.uniform(k4, (c,), jnp.float32, 0.5, 1.5)
    scale = gamma / jnp.sqrt(var + 1e-5)
    bias = beta - mean * scale
    return scale.reshape(1, c), bias.reshape(1, c)


def init_params(key, inp, oup, expand_ratio):
    hidden = int(round(inp * expand_ratio))
    keys = jax.random.split(key, 6)
    p = {}
    if expand_ratio != 1:
        # torch Conv2d(inp, hidden, 1): (hidden, inp, 1, 1) -> (inp, hidden)
        p["w_exp"] = 0.2 * jax.random.normal(keys[0], (inp, hidden), jnp.float32)
        p["s_exp"], p["b_exp"] = _folded_bn(keys[1], hidden)
    # torch depthwise Conv2d(hidden, hidden, 3, groups=hidden): (hidden,1,3,3)
    # -> (3, 3, hidden)
    p["w_dw"] = 0.2 * jax.random.normal(keys[2], (3, 3, hidden), jnp.float32)
    p["s_dw"], p["b_dw"] = _folded_bn(keys[3], hidden)
    # torch Conv2d(hidden, oup, 1): (oup, hidden, 1, 1) -> (hidden, oup)
    p["w_proj"] = 0.2 * jax.random.normal(keys[4], (hidden, oup), jnp.float32)
    p["s_proj"], p["b_proj"] = _folded_bn(keys[5], oup)
    return p


def _fold_scales(params, expand_ratio):
    """Fold the (eval-mode) BN scale into the conv weights; keep biases."""
    f = {}
    if expand_ratio != 1:
        f["w_exp"] = params["w_exp"] * params["s_exp"][0]     # per-out-column
        f["b_exp"] = params["b_exp"]
    f["w_dw"] = params["w_dw"] * params["s_dw"][0]            # per-channel
    f["b_dw"] = params["b_dw"]
    f["w_proj"] = params["w_proj"] * params["s_proj"][0]      # per-out-column
    f["b_proj"] = params["b_proj"]
    return f


# ----------------------------------------------------------------------------
# Forward (matches InvertedResidual.forward; NCHW in / NCHW out)
# ----------------------------------------------------------------------------
def inverted_residual(x_nchw, params, *, inp, oup, stride, expand_ratio):
    assert stride in (1, 2)
    N, Cin, H, W = x_nchw.shape
    assert Cin == inp
    hidden = int(round(inp * expand_ratio))          # static (no traced ints)
    has_expand = expand_ratio != 1
    use_res = (stride == 1) and (inp == oup)

    # Lane-dense (multiple-of-128) padded channel counts.
    Cin_p = _round_up(inp)
    Ch_p = _round_up(hidden)
    Cout_p = _round_up(oup)

    Ho = (H - 1) // stride + 1                       # 3x3, pad=1
    Wo = (W - 1) // stride + 1

    bh_in = _pick_band(H, 8)
    nb_in = H // bh_in
    bh_out = _pick_band(Ho, 8)
    nb_out = Ho // bh_out

    # ---- glue: NCHW -> NHWC, zero-pad channels to lane width ----
    x = jnp.transpose(x_nchw, (0, 2, 3, 1))
    x_p = jnp.pad(x, ((0, 0), (0, 0), (0, 0), (0, Cin_p - inp)))

    # ---- glue: fold BN scales into weights, pad, bf16-cast matmul weights ---
    fold = _fold_scales(params, expand_ratio)
    w_dw_p = jnp.pad(fold["w_dw"].reshape(9, hidden),
                     ((0, 0), (0, Ch_p - hidden)))
    b_dw_p = _pad_last(fold["b_dw"], Ch_p)
    w_proj_p = jnp.pad(fold["w_proj"],
                       ((0, Ch_p - hidden), (0, Cout_p - oup))
                       ).astype(jnp.bfloat16)
    b_proj_p = _pad_last(fold["b_proj"], Cout_p)

    args = [x_p]
    in_specs = [pl.BlockSpec((None, H, W, Cin_p), lambda n: (n, 0, 0, 0))]
    if has_expand:
        w_exp_p = jnp.pad(fold["w_exp"],
                          ((0, Cin_p - inp), (0, Ch_p - hidden))
                          ).astype(jnp.bfloat16)
        b_exp_p = _pad_last(fold["b_exp"], Ch_p)
        args += [w_exp_p, b_exp_p]
        in_specs += [
            pl.BlockSpec((Cin_p, Ch_p), lambda n: (0, 0)),
            pl.BlockSpec((1, Ch_p), lambda n: (0, 0)),
        ]
    args += [w_dw_p, b_dw_p, w_proj_p, b_proj_p]
    in_specs += [
        pl.BlockSpec((9, Ch_p), lambda n: (0, 0)),
        pl.BlockSpec((1, Ch_p), lambda n: (0, 0)),
        pl.BlockSpec((Ch_p, Cout_p), lambda n: (0, 0)),
        pl.BlockSpec((1, Cout_p), lambda n: (0, 0)),
    ]

    kernel = _make_fused_kernel(
        H=H, W=W, Ho=Ho, Wo=Wo, stride=stride,
        Cin_p=Cin_p, Ch_p=Ch_p, Cout_p=Cout_p,
        has_expand=has_expand, use_res=use_res,
        bh_in=bh_in, nb_in=nb_in, bh_out=bh_out, nb_out=nb_out)

    y_p = pl.pallas_call(
        kernel,
        out_shape=jax.ShapeDtypeStruct((N, Ho, Wo, Cout_p), x.dtype),
        grid=(N,),
        in_specs=in_specs,
        out_specs=pl.BlockSpec((None, Ho, Wo, Cout_p), lambda n: (n, 0, 0, 0)),
        scratch_shapes=[pltpu.VMEM((H + 2, W + 2, Ch_p), jnp.float32)],
        compiler_params=pltpu.CompilerParams(
            dimension_semantics=("parallel",),
            # 32 MiB: safe on v5e/v6e (128 MiB) and below v7x physical 64 MiB.
            vmem_limit_bytes=32 * 1024 * 1024),
    )(*args)

    y = y_p[..., :oup]                               # drop padded out channels
    return jnp.transpose(y, (0, 3, 1, 2))            # back to NCHW


# ----------------------------------------------------------------------------
# Pure-JAX reference (independent path via lax.conv) for validation.
# Mirrors the kernel's bf16 MXU inputs on the two 1x1 convs so the tolerance
# stays tight; depthwise is f32 HIGHEST.
# ----------------------------------------------------------------------------
def reference(x_nchw, params, *, inp, oup, stride, expand_ratio):
    hidden = int(round(inp * expand_ratio))
    use_res = (stride == 1) and (inp == oup)
    fold = _fold_scales(params, expand_ratio)
    hi = lax.Precision.HIGHEST
    x = jnp.transpose(x_nchw, (0, 2, 3, 1))
    h = x
    if expand_ratio != 1:
        h = jnp.einsum("nhwc,cd->nhwd",
                       x.astype(jnp.bfloat16),
                       fold["w_exp"].astype(jnp.bfloat16),
                       preferred_element_type=jnp.float32)
        h = jnp.clip(h + fold["b_exp"][0], 0.0, 6.0)
    dw_w = fold["w_dw"].reshape(3, 3, 1, hidden)     # HWIO, grouped
    d = lax.conv_general_dilated(
        h, dw_w, window_strides=(stride, stride), padding=((1, 1), (1, 1)),
        dimension_numbers=("NHWC", "HWIO", "NHWC"),
        feature_group_count=hidden, precision=hi)
    d = jnp.clip(d + fold["b_dw"][0], 0.0, 6.0)
    y = jnp.einsum("nhwc,cd->nhwd",
                   d.astype(jnp.bfloat16),
                   fold["w_proj"].astype(jnp.bfloat16),
                   preferred_element_type=jnp.float32)
    y = y + fold["b_proj"][0]
    if use_res:
        y = y + x
    return jnp.transpose(y, (0, 3, 1, 2))


if __name__ == "__main__":
    key = jax.random.PRNGKey(0)

    configs = [
        # (inp, oup, stride, expand_ratio, N, H, W)
        (4, 4, 1, 4, 2, 16, 16),     # expand path + residual
        (8, 8, 1, 1, 2, 16, 16),     # expand_ratio == 1 (no expand) + residual
    ]
    for idx, (inp, oup, stride, er, N, H, W) in enumerate(configs):
        kx, kp = jax.random.split(jax.random.fold_in(key, idx))
        x = jax.random.normal(kx, (N, inp, H, W), jnp.float32)
        params = init_params(kp, inp, oup, er)

        fwd = jax.jit(functools.partial(
            inverted_residual, inp=inp, oup=oup, stride=stride,
            expand_ratio=er))
        out = jax.block_until_ready(fwd(x, params))

        ref = reference(x, params, inp=inp, oup=oup, stride=stride,
                        expand_ratio=er)
        Ho = (H - 1) // stride + 1
        Wo = (W - 1) // stride + 1
        assert out.shape == (N, oup, Ho, Wo)
        # Tolerance allows for bf16 double-rounding differences between the
        # Pallas MXU path and the XLA reference (both use bf16 matmul inputs).
        assert jnp.allclose(out, ref, atol=5e-2, rtol=5e-2), \
            "mismatch vs reference"

    print("KERNEL_OK")
</pallas_src>

<mosaic_0001>
module attributes {stable_mosaic.version = 11 : i64} {
  func.func @kernel(%arg0: i32, %arg1: memref<1x16x16x128xf32, #tpu.memory_space<vmem>>, %arg2: memref<128x128xbf16, #tpu.memory_space<vmem>>, %arg3: memref<1x128xf32, #tpu.memory_space<vmem>>, %arg4: memref<9x128xf32, #tpu.memory_space<vmem>>, %arg5: memref<1x128xf32, #tpu.memory_space<vmem>>, %arg6: memref<128x128xbf16, #tpu.memory_space<vmem>>, %arg7: memref<1x128xf32, #tpu.memory_space<vmem>>, %arg8: memref<1x16x16x128xf32, #tpu.memory_space<vmem>>, %arg9: memref<18x18x128xf32, #tpu.memory_space<vmem>>) attributes {dimension_semantics = [#tpu.dimension_semantics<parallel>], iteration_bounds = array<i64: 2>, scalar_prefetch = 0 : i64, scratch_operands = 1 : i64, tpu.core_type = #tpu.core_type<tc>, window_params = [{transform_indices = @transform_0, window_bounds = array<i64: 1, 16, 16, 128>}, {pipeline_mode = #tpu.pipeline_mode<synchronous>, transform_indices = @transform_1, window_bounds = array<i64: 128, 128>}, {pipeline_mode = #tpu.pipeline_mode<synchronous>, transform_indices = @transform_2, window_bounds = array<i64: 1, 128>}, {pipeline_mode = #tpu.pipeline_mode<synchronous>, transform_indices = @transform_3, window_bounds = array<i64: 9, 128>}, {pipeline_mode = #tpu.pipeline_mode<synchronous>, transform_indices = @transform_4, window_bounds = array<i64: 1, 128>}, {pipeline_mode = #tpu.pipeline_mode<synchronous>, transform_indices = @transform_5, window_bounds = array<i64: 128, 128>}, {pipeline_mode = #tpu.pipeline_mode<synchronous>, transform_indices = @transform_6, window_bounds = array<i64: 1, 128>}, {transform_indices = @transform_7, window_bounds = array<i64: 1, 16, 16, 128>}]} {
    %cst = arith.constant 0.000000e+00 : f32
    %0 = vector.broadcast %cst : f32 to vector<1x18x128xf32>
    %cst_0 = arith.constant 0.000000e+00 : f32
    %1 = vector.broadcast %cst_0 : f32 to vector<18x1x128xf32>
    %c0 = arith.constant 0 : index
    %c0_1 = arith.constant 0 : index
    %c0_2 = arith.constant 0 : index
    %2 = vector.load %arg9[%c0, %c0_1, %c0_2] : memref<18x18x128xf32, #tpu.memory_space<vmem>>, vector<1x18x128xf32>
    tpu.vector_store %arg9[%c0, %c0_1, %c0_2], %0 {strides = array<i32>} : memref<18x18x128xf32, #tpu.memory_space<vmem>>, vector<1x18x128xf32>,
    %c17 = arith.constant 17 : index
    %c0_3 = arith.constant 0 : index
    %c0_4 = arith.constant 0 : index
    %3 = vector.load %arg9[%c17, %c0_3, %c0_4] : memref<18x18x128xf32, #tpu.memory_space<vmem>>, vector<1x18x128xf32>
    tpu.vector_store %arg9[%c17, %c0_3, %c0_4], %0 {strides = array<i32>} : memref<18x18x128xf32, #tpu.memory_space<vmem>>, vector<1x18x128xf32>,
    %c0_5 = arith.constant 0 : index
    %c0_6 = arith.constant 0 : index
    %c0_7 = arith.constant 0 : index
    %4 = vector.load %arg9[%c0_5, %c0_6, %c0_7] : memref<18x18x128xf32, #tpu.memory_space<vmem>>, vector<18x1x128xf32>
    tpu.vector_store %arg9[%c0_5, %c0_6, %c0_7], %1 {strides = array<i32>} : memref<18x18x128xf32, #tpu.memory_space<vmem>>, vector<18x1x128xf32>,
    %c0_8 = arith.constant 0 : index
    %c17_9 = arith.constant 17 : index
    %c0_10 = arith.constant 0 : index
    %5 = vector.load %arg9[%c0_8, %c17_9, %c0_10] : memref<18x18x128xf32, #tpu.memory_space<vmem>>, vector<18x1x128xf32>
    tpu.vector_store %arg9[%c0_8, %c17_9, %c0_10], %1 {strides = array<i32>} : memref<18x18x128xf32, #tpu.memory_space<vmem>>, vector<18x1x128xf32>,
    %c0_i32 = arith.constant 0 : i32
    %c2_i32 = arith.constant 2 : i32
    %6 = arith.addi %c0_i32, %c2_i32 : i32
    %c1_i32 = arith.constant 1 : i32
    scf.for %arg10 = %c0_i32 to %6 step %c1_i32  : i32 {
      %c8_i32 = arith.constant 8 : i32
      %8 = arith.muli %arg10, %c8_i32 : i32
      %9 = tpu.assume_multiple %8, 8 : i32
      %c0_16 = arith.constant 0 : index
      %10 = arith.index_cast %9 : i32 to index
      %c0_17 = arith.constant 0 : index
      %c0_18 = arith.constant 0 : index
      %11 = vector.load %arg1[%c0_16, %10, %c0_17, %c0_18] : memref<1x16x16x128xf32, #tpu.memory_space<vmem>>, vector<1x8x16x128xf32>
      %12 = vector.shape_cast %11 : vector<1x8x16x128xf32> to vector<8x16x128xf32>
      %13 = vector.shape_cast %12 : vector<8x16x128xf32> to vector<128x128xf32>
      %14 = arith.truncf %13 : vector<128x128xf32> to vector<128x128xbf16>
      %c0_19 = arith.constant 0 : index
      %c0_20 = arith.constant 0 : index
      %15 = vector.load %arg2[%c0_19, %c0_20] : memref<128x128xbf16, #tpu.memory_space<vmem>>, vector<128x128xbf16>
      %cst_21 = arith.constant dense<0.000000e+00> : vector<128x128xf32>
      %16 = tpu.matmul %14, %15, %cst_21 {dimension_numbers = #tpu.dot_dimension_numbers<[1], [0], [0], [1], [0, 0, 1, 1], [], []>} : vector<128x128xbf16>, vector<128x128xbf16>, vector<128x128xf32> -> vector<128x128xf32>
      %c0_22 = arith.constant 0 : index
      %c0_23 = arith.constant 0 : index
      %17 = vector.load %arg3[%c0_22, %c0_23] : memref<1x128xf32, #tpu.memory_space<vmem>>, vector<1x128xf32>
      %18 = vector.broadcast %17 : vector<1x128xf32> to vector<128x128xf32>
      %19 = arith.addf %16, %18 : vector<128x128xf32>
      %cst_24 = arith.constant 0.000000e+00 : f32
      %cst_25 = arith.constant 6.000000e+00 : f32
      %20 = vector.broadcast %cst_24 : f32 to vector<128x128xf32>
      %21 = arith.maximumf %20, %19 : vector<128x128xf32>
      %22 = vector.broadcast %cst_25 : f32 to vector<128x128xf32>
      %23 = arith.minimumf %22, %21 : vector<128x128xf32>
      %24 = vector.shape_cast %23 : vector<128x128xf32> to vector<8x16x128xf32>
      %c1_i32_26 = arith.constant 1 : i32
      %25 = arith.addi %9, %c1_i32_26 : i32
      %26 = arith.index_cast %25 : i32 to index
      %c1 = arith.constant 1 : index
      %c0_27 = arith.constant 0 : index
      %27 = vector.load %arg9[%26, %c1, %c0_27] : memref<18x18x128xf32, #tpu.memory_space<vmem>>, vector<8x16x128xf32>
      tpu.vector_store %arg9[%26, %c1, %c0_27], %24 {strides = array<i32>} : memref<18x18x128xf32, #tpu.memory_space<vmem>>, vector<8x16x128xf32>,
    }
    %c2_i32_11 = arith.constant 2 : i32
    %c0_i32_12 = arith.constant 0 : i32
    %c2_i32_13 = arith.constant 2 : i32
    %7 = arith.addi %c0_i32_12, %c2_i32_13 : i32
    %c1_i32_14 = arith.constant 1 : i32
    scf.for %arg10 = %c0_i32_12 to %7 step %c1_i32_14  : i32 {
      %c8_i32 = arith.constant 8 : i32
      %8 = arith.muli %arg10, %c8_i32 : i32
      %9 = tpu.assume_multiple %8, 8 : i32
      %cst_16 = arith.constant 0.000000e+00 : f32
      %10 = vector.broadcast %cst_16 : f32 to vector<8x16x128xf32>
      %c0_i32_17 = arith.constant 0 : i32
      %11 = arith.addi %9, %c0_i32_17 : i32
      %12 = arith.index_cast %11 : i32 to index
      %c0_18 = arith.constant 0 : index
      %c0_19 = arith.constant 0 : index
      %13 = vector.load %arg9[%12, %c0_18, %c0_19] : memref<18x18x128xf32, #tpu.memory_space<vmem>>, vector<8x16x128xf32>
      %c0_20 = arith.constant 0 : index
      %c0_21 = arith.constant 0 : index
      %14 = vector.load %arg4[%c0_20, %c0_21] : memref<9x128xf32, #tpu.memory_space<vmem>>, vector<1x128xf32>
      %15 = vector.shape_cast %14 : vector<1x128xf32> to vector<128xf32>
      %16 = vector.shape_cast %15 : vector<128xf32> to vector<1x1x128xf32>
      %17 = vector.broadcast %16 : vector<1x1x128xf32> to vector<8x16x128xf32>
      %18 = arith.mulf %13, %17 : vector<8x16x128xf32>
      %19 = arith.addf %10, %18 : vector<8x16x128xf32>
      %c0_i32_22 = arith.constant 0 : i32
      %20 = arith.addi %9, %c0_i32_22 : i32
      %21 = arith.index_cast %20 : i32 to index
      %c1 = arith.constant 1 : index
      %c0_23 = arith.constant 0 : index
      %22 = vector.load %arg9[%21, %c1, %c0_23] : memref<18x18x128xf32, #tpu.memory_space<vmem>>, vector<8x16x128xf32>
      %c1_24 = arith.constant 1 : index
      %c0_25 = arith.constant 0 : index
      %23 = vector.load %arg4[%c1_24, %c0_25] : memref<9x128xf32, #tpu.memory_space<vmem>>, vector<1x128xf32>
      %24 = vector.shape_cast %23 : vector<1x128xf32> to vector<128xf32>
      %25 = vector.shape_cast %24 : vector<128xf32> to vector<1x1x128xf32>
      %26 = vector.broadcast %25 : vector<1x1x128xf32> to vector<8x16x128xf32>
      %27 = arith.mulf %22, %26 : vector<8x16x128xf32>
      %28 = arith.addf %19, %27 : vector<8x16x128xf32>
      %c0_i32_26 = arith.constant 0 : i32
      %29 = arith.addi %9, %c0_i32_26 : i32
      %30 = arith.index_cast %29 : i32 to index
      %c2 = arith.constant 2 : index
      %c0_27 = arith.constant 0 : index
      %31 = vector.load %arg9[%30, %c2, %c0_27] : memref<18x18x128xf32, #tpu.memory_space<vmem>>, vector<8x16x128xf32>
      %c2_28 = arith.constant 2 : index
      %c0_29 = arith.constant 0 : index
      %32 = vector.load %arg4[%c2_28, %c0_29] : memref<9x128xf32, #tpu.memory_space<vmem>>, vector<1x128xf32>
      %33 = vector.shape_cast %32 : vector<1x128xf32> to vector<128xf32>
      %34 = vector.shape_cast %33 : vector<128xf32> to vector<1x1x128xf32>
      %35 = vector.broadcast %34 : vector<1x1x128xf32> to vector<8x16x128xf32>
      %36 = arith.mulf %31, %35 : vector<8x16x128xf32>
      %37 = arith.addf %28, %36 : vector<8x16x128xf32>
      %c1_i32_30 = arith.constant 1 : i32
      %38 = arith.addi %9, %c1_i32_30 : i32
      %39 = arith.index_cast %38 : i32 to index
      %c0_31 = arith.constant 0 : index
      %c0_32 = arith.constant 0 : index
      %40 = vector.load %arg9[%39, %c0_31, %c0_32] : memref<18x18x128xf32, #tpu.memory_space<vmem>>, vector<8x16x128xf32>
      %c3 = arith.constant 3 : index
      %c0_33 = arith.constant 0 : index
      %41 = vector.load %arg4[%c3, %c0_33] : memref<9x128xf32, #tpu.memory_space<vmem>>, vector<1x128xf32>
      %42 = vector.shape_cast %41 : vector<1x128xf32> to vector<128xf32>
      %43 = vector.shape_cast %42 : vector<128xf32> to vector<1x1x128xf32>
      %44 = vector.broadcast %43 : vector<1x1x128xf32> to vector<8x16x128xf32>
      %45 = arith.mulf %40, %44 : vector<8x16x128xf32>
      %46 = arith.addf %37, %45 : vector<8x16x128xf32>
      %c1_i32_34 = arith.constant 1 : i32
      %47 = arith.addi %9, %c1_i32_34 : i32
      %48 = arith.index_cast %47 : i32 to index
      %c1_35 = arith.constant 1 : index
      %c0_36 = arith.constant 0 : index
      %49 = vector.load %arg9[%48, %c1_35, %c0_36] : memref<18x18x128xf32, #tpu.memory_space<vmem>>, vector<8x16x128xf32>
      %c4 = arith.constant 4 : index
      %c0_37 = arith.constant 0 : index
      %50 = vector.load %arg4[%c4, %c0_37] : memref<9x128xf32, #tpu.memory_space<vmem>>, vector<1x128xf32>
      %51 = vector.shape_cast %50 : vector<1x128xf32> to vector<128xf32>
      %52 = vector.shape_cast %51 : vector<128xf32> to vector<1x1x128xf32>
      %53 = vector.broadcast %52 : vector<1x1x128xf32> to vector<8x16x128xf32>
      %54 = arith.mulf %49, %53 : vector<8x16x128xf32>
      %55 = arith.addf %46, %54 : vector<8x16x128xf32>
      %c1_i32_38 = arith.constant 1 : i32
      %56 = arith.addi %9, %c1_i32_38 : i32
      %57 = arith.index_cast %56 : i32 to index
      %c2_39 = arith.constant 2 : index
      %c0_40 = arith.constant 0 : index
      %58 = vector.load %arg9[%57, %c2_39, %c0_40] : memref<18x18x128xf32, #tpu.memory_space<vmem>>, vector<8x16x128xf32>
      %c5 = arith.constant 5 : index
      %c0_41 = arith.constant 0 : index
      %59 = vector.load %arg4[%c5, %c0_41] : memref<9x128xf32, #tpu.memory_space<vmem>>, vector<1x128xf32>
      %60 = vector.shape_cast %59 : vector<1x128xf32> to vector<128xf32>
      %61 = vector.shape_cast %60 : vector<128xf32> to vector<1x1x128xf32>
      %62 = vector.broadcast %61 : vector<1x1x128xf32> to vector<8x16x128xf32>
      %63 = arith.mulf %58, %62 : vector<8x16x128xf32>
      %64 = arith.addf %55, %63 : vector<8x16x128xf32>
      %c2_i32_42 = arith.constant 2 : i32
      %65 = arith.addi %9, %c2_i32_42 : i32
      %66 = arith.index_cast %65 : i32 to index
      %c0_43 = arith.constant 0 : index
      %c0_44 = arith.constant 0 : index
      %67 = vector.load %arg9[%66, %c0_43, %c0_44] : memref<18x18x128xf32, #tpu.memory_space<vmem>>, vector<8x16x128xf32>
      %c6 = arith.constant 6 : index
      %c0_45 = arith.constant 0 : index
      %68 = vector.load %arg4[%c6, %c0_45] : memref<9x128xf32, #tpu.memory_space<vmem>>, vector<1x128xf32>
      %69 = vector.shape_cast %68 : vector<1x128xf32> to vector<128xf32>
      %70 = vector.shape_cast %69 : vector<128xf32> to vector<1x1x128xf32>
      %71 = vector.broadcast %70 : vector<1x1x128xf32> to vector<8x16x128xf32>
      %72 = arith.mulf %67, %71 : vector<8x16x128xf32>
      %73 = arith.addf %64, %72 : vector<8x16x128xf32>
      %c2_i32_46 = arith.constant 2 : i32
      %74 = arith.addi %9, %c2_i32_46 : i32
      %75 = arith.index_cast %74 : i32 to index
      %c1_47 = arith.constant 1 : index
      %c0_48 = arith.constant 0 : index
      %76 = vector.load %arg9[%75, %c1_47, %c0_48] : memref<18x18x128xf32, #tpu.memory_space<vmem>>, vector<8x16x128xf32>
      %c7 = arith.constant 7 : index
      %c0_49 = arith.constant 0 : index
      %77 = vector.load %arg4[%c7, %c0_49] : memref<9x128xf32, #tpu.memory_space<vmem>>, vector<1x128xf32>
      %78 = vector.shape_cast %77 : vector<1x128xf32> to vector<128xf32>
      %79 = vector.shape_cast %78 : vector<128xf32> to vector<1x1x128xf32>
      %80 = vector.broadcast %79 : vector<1x1x128xf32> to vector<8x16x128xf32>
      %81 = arith.mulf %76, %80 : vector<8x16x128xf32>
      %82 = arith.addf %73, %81 : vector<8x16x128xf32>
      %c2_i32_50 = arith.constant 2 : i32
      %83 = arith.addi %9, %c2_i32_50 : i32
      %84 = arith.index_cast %83 : i32 to index
      %c2_51 = arith.constant 2 : index
      %c0_52 = arith.constant 0 : index
      %85 = vector.load %arg9[%84, %c2_51, %c0_52] : memref<18x18x128xf32, #tpu.memory_space<vmem>>, vector<8x16x128xf32>
      %c8 = arith.constant 8 : index
      %c0_53 = arith.constant 0 : index
      %86 = vector.load %arg4[%c8, %c0_53] : memref<9x128xf32, #tpu.memory_space<vmem>>, vector<1x128xf32>
      %87 = vector.shape_cast %86 : vector<1x128xf32> to vector<128xf32>
      %88 = vector.shape_cast %87 : vector<128xf32> to vector<1x1x128xf32>
      %89 = vector.broadcast %88 : vector<1x1x128xf32> to vector<8x16x128xf32>
      %90 = arith.mulf %85, %89 : vector<8x16x128xf32>
      %91 = arith.addf %82, %90 : vector<8x16x128xf32>
      %c0_54 = arith.constant 0 : index
      %c0_55 = arith.constant 0 : index
      %92 = vector.load %arg5[%c0_54, %c0_55] : memref<1x128xf32, #tpu.memory_space<vmem>>, vector<1x128xf32>
      %93 = vector.shape_cast %92 : vector<1x128xf32> to vector<1x1x128xf32>
      %94 = vector.broadcast %93 : vector<1x1x128xf32> to vector<8x16x128xf32>
      %95 = arith.addf %91, %94 : vector<8x16x128xf32>
      %cst_56 = arith.constant 0.000000e+00 : f32
      %cst_57 = arith.constant 6.000000e+00 : f32
      %96 = vector.broadcast %cst_56 : f32 to vector<8x16x128xf32>
      %97 = arith.maximumf %96, %95 : vector<8x16x128xf32>
      %98 = vector.broadcast %cst_57 : f32 to vector<8x16x128xf32>
      %99 = arith.minimumf %98, %97 : vector<8x16x128xf32>
      %100 = vector.shape_cast %99 : vector<8x16x128xf32> to vector<128x128xf32>
      %101 = arith.truncf %100 : vector<128x128xf32> to vector<128x128xbf16>
      %c0_58 = arith.constant 0 : index
      %c0_59 = arith.constant 0 : index
      %102 = vector.load %arg6[%c0_58, %c0_59] : memref<128x128xbf16, #tpu.memory_space<vmem>>, vector<128x128xbf16>
      %cst_60 = arith.constant dense<0.000000e+00> : vector<128x128xf32>
      %103 = tpu.matmul %101, %102, %cst_60 {dimension_numbers = #tpu.dot_dimension_numbers<[1], [0], [0], [1], [0, 0, 1, 1], [], []>} : vector<128x128xbf16>, vector<128x128xbf16>, vector<128x128xf32> -> vector<128x128xf32>
      %c0_61 = arith.constant 0 : index
      %c0_62 = arith.constant 0 : index
      %104 = vector.load %arg7[%c0_61, %c0_62] : memref<1x128xf32, #tpu.memory_space<vmem>>, vector<1x128xf32>
      %105 = vector.broadcast %104 : vector<1x128xf32> to vector<128x128xf32>
      %106 = arith.addf %103, %105 : vector<128x128xf32>
      %c0_63 = arith.constant 0 : index
      %107 = arith.index_cast %9 : i32 to index
      %c0_64 = arith.constant 0 : index
      %c0_65 = arith.constant 0 : index
      %108 = vector.load %arg1[%c0_63, %107, %c0_64, %c0_65] : memref<1x16x16x128xf32, #tpu.memory_space<vmem>>, vector<1x8x16x128xf32>
      %109 = vector.shape_cast %108 : vector<1x8x16x128xf32> to vector<8x16x128xf32>
      %110 = vector.shape_cast %109 : vector<8x16x128xf32> to vector<128x128xf32>
      %111 = arith.addf %106, %110 : vector<128x128xf32>
      %112 = vector.shape_cast %111 : vector<128x128xf32> to vector<8x16x128xf32>
      %c0_66 = arith.constant 0 : index
      %113 = arith.index_cast %9 : i32 to index
      %c0_67 = arith.constant 0 : index
      %c0_68 = arith.constant 0 : index
      %114 = vector.load %arg8[%c0_66, %113, %c0_67, %c0_68] : memref<1x16x16x128xf32, #tpu.memory_space<vmem>>, vector<1x8x16x128xf32>
      %115 = vector.shape_cast %114 : vector<1x8x16x128xf32> to vector<8x16x128xf32>
      %116 = vector.shape_cast %112 : vector<8x16x128xf32> to vector<1x8x16x128xf32>
      tpu.vector_store %arg8[%c0_66, %113, %c0_67, %c0_68], %116 {strides = array<i32>} : memref<1x16x16x128xf32, #tpu.memory_space<vmem>>, vector<1x8x16x128xf32>,
    }
    %c2_i32_15 = arith.constant 2 : i32
    return
  }
  func.func @transform_0(%arg0: i32) -> (i32, i32, i32, i32) {
    %c0_i32 = arith.constant 0 : i32
    %c0_i32_0 = arith.constant 0 : i32
    %c0_i32_1 = arith.constant 0 : i32
    %c0_i32_2 = arith.constant 0 : i32
    return %arg0, %c0_i32, %c0_i32_0, %c0_i32_1 : i32, i32, i32, i32
  }
  func.func @transform_1(%arg0: i32) -> (i32, i32) {
    %c0_i32 = arith.constant 0 : i32
    %c0_i32_0 = arith.constant 0 : i32
    %c0_i32_1 = arith.constant 0 : i32
    return %c0_i32, %c0_i32_0 : i32, i32
  }
  func.func @transform_2(%arg0: i32) -> (i32, i32) {
    %c0_i32 = arith.constant 0 : i32
    %c0_i32_0 = arith.constant 0 : i32
    %c0_i32_1 = arith.constant 0 : i32
    return %c0_i32, %c0_i32_0 : i32, i32
  }
  func.func @transform_3(%arg0: i32) -> (i32, i32) {
    %c0_i32 = arith.constant 0 : i32
    %c0_i32_0 = arith.constant 0 : i32
    %c0_i32_1 = arith.constant 0 : i32
    return %c0_i32, %c0_i32_0 : i32, i32
  }
  func.func @transform_4(%arg0: i32) -> (i32, i32) {
    %c0_i32 = arith.constant 0 : i32
    %c0_i32_0 = arith.constant 0 : i32
    %c0_i32_1 = arith.constant 0 : i32
    return %c0_i32, %c0_i32_0 : i32, i32
  }
  func.func @transform_5(%arg0: i32) -> (i32, i32) {
    %c0_i32 = arith.constant 0 : i32
    %c0_i32_0 = arith.constant 0 : i32
    %c0_i32_1 = arith.constant 0 : i32
    return %c0_i32, %c0_i32_0 : i32, i32
  }
  func.func @transform_6(%arg0: i32) -> (i32, i32) {
    %c0_i32 = arith.constant 0 : i32
    %c0_i32_0 = arith.constant 0 : i32
    %c0_i32_1 = arith.constant 0 : i32
    return %c0_i32, %c0_i32_0 : i32, i32
  }
  func.func @transform_7(%arg0: i32) -> (i32, i32, i32, i32) {
    %c0_i32 = arith.constant 0 : i32
    %c0_i32_0 = arith.constant 0 : i32
    %c0_i32_1 = arith.constant 0 : i32
    %c0_i32_2 = arith.constant 0 : i32
    return %arg0, %c0_i32, %c0_i32_0, %c0_i32_1 : i32, i32, i32, i32
  }
}

</mosaic_0001>

<llo_original>
// kernel: inverted_residual.1
$region0: #{inverted_residual.1}
  #allocation0 [shape = 'u32[]', space=smem, size = 0x4, offset = 0x4, fixed_abs, tag = 'smem constant byte address 0x4 - core index']
  #allocation1 [shape = 'u32[72,128]{1,0:T(1,128)}', space=vmem, size = 0x9000, scoped, tag = 'internal scratch']
  #allocation2 [shape = 'f32[18,18,128]{2,1,0:T(8,128)}', space=vmem, size = 0x36000, scoped, tag = 'scratch operand']
  %s0 = inlined_call_operand.vmem [shape: f32[2,16,16,128], index: 0, kind: input, shape index: {}]
  %s1 = inlined_call_operand.vmem [shape: bf16[128,128], index: 1, kind: input, shape index: {}]
  %s2 = inlined_call_operand.vmem [shape: f32[1,128], index: 2, kind: input, shape index: {}]
  %s3 = inlined_call_operand.vmem [shape: f32[9,128], index: 3, kind: input, shape index: {}]
  %s4 = inlined_call_operand.vmem [shape: f32[1,128], index: 4, kind: input, shape index: {}]
  %s5 = inlined_call_operand.vmem [shape: bf16[128,128], index: 5, kind: input, shape index: {}]
  %s6 = inlined_call_operand.vmem [shape: f32[1,128], index: 6, kind: input, shape index: {}]
  %s7 = inlined_call_operand.vmem [shape: f32[2,16,16,128], index: 7, kind: output, shape index: {}]
  %s8 = sld [smem:[#allocation0]]
  $region75: #{inverted_residual.1} parent=0
    _
  %s10 = ssub.s32 1, %s8
  %s11 = scalar_select 0, %s10, %s8
  loop: start=0, step=1, limit=4
  $region2: #{inverted_residual.1} parent=0 // loop_pre_header
    _
  $region3: #{inverted_residual.1} parent=0 // loop_header
    %s13 = sphi 0, %s17
    %p14 = scmp.ge.s32.totalorder %s13, 4
    %s23 = sphi 0, %s25
    %s26 = sphi 0, %s23
    %s27 = sphi 0, %s26
    %s43 = sphi 0, %s27
    %s47 = sphi 0, %s47
    %s49 = sphi 0, %s47
    %s50 = sphi 0, %s49
    %s64 = sphi 0, %s50
    %s68 = sphi 0, %s68
    %s70 = sphi 0, %s68
    %s71 = sphi 0, %s70
    %s85 = sphi 0, %s71
    %s89 = sphi 0, %s89
    %s91 = sphi 0, %s89
    %s92 = sphi 0, %s91
    %s106 = sphi 0, %s92
    %s110 = sphi 0, %s110
    %s112 = sphi 0, %s110
    %s113 = sphi 0, %s112
    %s127 = sphi 0, %s113
    %s131 = sphi 0, %s131
    %s133 = sphi 0, %s131
    %s134 = sphi 0, %s133
    %s148 = sphi 0, %s134
    %s152 = sphi 0, %s152
    %s154 = sphi 0, %s152
    %s155 = sphi 0, %s154
    %s169 = sphi 0, %s155
    %s175 = sphi 0, %s177
    %s178 = sphi 0, %s175
    %s179 = sphi 0, %s178
    %s195 = sphi 0, %s179
  $region4: #{inverted_residual.1} parent=0 // loop_header_branch
    %16 = sbr.rel (%p14) target = $region8
  $region5: #{inverted_residual.1} parent=0 // loop_body
    %s18 = ssub.s32 %s13, 1
    %s19 = ssub.s32 %s13, 2
    %s20 = sadd.s32 %s13, 1
    %s21 = ssub.s32 %s13, %s20
    %p22 = scmp.eq.s32.totalorder %s21, 0
    %s24 = sadd.s32 %s23, 1
    %s25 = scalar_select %p22, %s23, %s24
    %p28 = pneg %p22
    %p29 = scmp.eq.s32.totalorder %s13, 1
    %p30 = por %p28, %p29
    %p31 = scmp.ne.s32.totalorder %s23, %s26
    %p32 = scmp.eq.s32.totalorder %s13, 0
    %p33 = por %p31, %p32
    %p34 = scmp.ne.s32.totalorder %s23, %s26
    %p35 = scmp.eq.s32.totalorder %s18, 1
    %p36 = por %p34, %p35
    %p37 = scmp.ne.s32.totalorder %s26, %s27
    %p38 = scmp.eq.s32.totalorder %s18, 0
    %p39 = por %p37, %p38
    %p40 = scmp.ne.s32.totalorder %s26, %s27
    %p41 = scmp.eq.s32.totalorder %s19, 1
    %p42 = por %p40, %p41
    %p44 = scmp.ne.s32.totalorder %s27, %s43
    %p45 = scmp.eq.s32.totalorder %s19, 0
    %p46 = por %p44, %p45
    %s48 = sadd.s32 %s47, 1
    %p51 = scmp.eq.s32.totalorder %s13, 1
    %p52 = scmp.ne.s32.totalorder %s47, %s49
    %p53 = scmp.eq.s32.totalorder %s13, 0
    %p54 = por %p52, %p53
    %p55 = scmp.ne.s32.totalorder %s47, %s49
    %p56 = scmp.eq.s32.totalorder %s18, 1
    %p57 = por %p55, %p56
    %p58 = scmp.ne.s32.totalorder %s49, %s50
    %p59 = scmp.eq.s32.totalorder %s18, 0
    %p60 = por %p58, %p59
    %p61 = scmp.ne.s32.totalorder %s49, %s50
    %p62 = scmp.eq.s32.totalorder %s19, 1
    %p63 = por %p61, %p62
    %p65 = scmp.ne.s32.totalorder %s50, %s64
    %p66 = scmp.eq.s32.totalorder %s19, 0
    %p67 = por %p65, %p66
    %s69 = sadd.s32 %s68, 1
    %p72 = scmp.eq.s32.totalorder %s13, 1
    %p73 = scmp.ne.s32.totalorder %s68, %s70
    %p74 = scmp.eq.s32.totalorder %s13, 0
    %p75 = por %p73, %p74
    %p76 = scmp.ne.s32.totalorder %s68, %s70
    %p77 = scmp.eq.s32.totalorder %s18, 1
    %p78 = por %p76, %p77
    %p79 = scmp.ne.s32.totalorder %s70, %s71
    %p80 = scmp.eq.s32.totalorder %s18, 0
    %p81 = por %p79, %p80
    %p82 = scmp.ne.s32.totalorder %s70, %s71
    %p83 = scmp.eq.s32.totalorder %s19, 1
    %p84 = por %p82, %p83
    %p86 = scmp.ne.s32.totalorder %s71, %s85
    %p87 = scmp.eq.s32.totalorder %s19, 0
    %p88 = por %p86, %p87
    %s90 = sadd.s32 %s89, 1
    %p93 = scmp.eq.s32.totalorder %s13, 1
    %p94 = scmp.ne.s32.totalorder %s89, %s91
    %p95 = scmp.eq.s32.totalorder %s13, 0
    %p96 = por %p94, %p95
    %p97 = scmp.ne.s32.totalorder %s89, %s91
    %p98 = scmp.eq.s32.totalorder %s18, 1
    %p99 = por %p97, %p98
    %p100 = scmp.ne.s32.totalorder %s91, %s92
    %p101 = scmp.eq.s32.totalorder %s18, 0
    %p102 = por %p100, %p101
    %p103 = scmp.ne.s32.totalorder %s91, %s92
    %p104 = scmp.eq.s32.totalorder %s19, 1
    %p105 = por %p103, %p104
    %p107 = scmp.ne.s32.totalorder %s92, %s106
    %p108 = scmp.eq.s32.totalorder %s19, 0
    %p109 = por %p107, %p108
    %s111 = sadd.s32 %s110, 1
    %p114 = scmp.eq.s32.totalorder %s13, 1
    %p115 = scmp.ne.s32.totalorder %s110, %s112
    %p116 = scmp.eq.s32.totalorder %s13, 0
    %p117 = por %p115, %p116
    %p118 = scmp.ne.s32.totalorder %s110, %s112
    %p119 = scmp.eq.s32.totalorder %s18, 1
    %p120 = por %p118, %p119
    %p121 = scmp.ne.s32.totalorder %s112, %s113
    %p122 = scmp.eq.s32.totalorder %s18, 0
    %p123 = por %p121, %p122
    %p124 = scmp.ne.s32.totalorder %s112, %s113
    %p125 = scmp.eq.s32.totalorder %s19, 1
    %p126 = por %p124, %p125
    %p128 = scmp.ne.s32.totalorder %s113, %s127
    %p129 = scmp.eq.s32.totalorder %s19, 0
    %p130 = por %p128, %p129
    %s132 = sadd.s32 %s131, 1
    %p135 = scmp.eq.s32.totalorder %s13, 1
    %p136 = scmp.ne.s32.totalorder %s131, %s133
    %p137 = scmp.eq.s32.totalorder %s13, 0
    %p138 = por %p136, %p137
    %p139 = scmp.ne.s32.totalorder %s131, %s133
    %p140 = scmp.eq.s32.totalorder %s18, 1
    %p141 = por %p139, %p140
    %p142 = scmp.ne.s32.totalorder %s133, %s134
    %p143 = scmp.eq.s32.totalorder %s18, 0
    %p144 = por %p142, %p143
    %p145 = scmp.ne.s32.totalorder %s133, %s134
    %p146 = scmp.eq.s32.totalorder %s19, 1
    %p147 = por %p145, %p146
    %p149 = scmp.ne.s32.totalorder %s134, %s148
    %p150 = scmp.eq.s32.totalorder %s19, 0
    %p151 = por %p149, %p150
    %s153 = sadd.s32 %s152, 1
    %p156 = scmp.eq.s32.totalorder %s13, 1
    %p157 = scmp.ne.s32.totalorder %s152, %s154
    %p158 = scmp.eq.s32.totalorder %s13, 0
    %p159 = por %p157, %p158
    %p160 = scmp.ne.s32.totalorder %s152, %s154
    %p161 = scmp.eq.s32.totalorder %s18, 1
    %p162 = por %p160, %p161
    %p163 = scmp.ne.s32.totalorder %s154, %s155
    %p164 = scmp.eq.s32.totalorder %s18, 0
    %p165 = por %p163, %p164
    %p166 = scmp.ne.s32.totalorder %s154, %s155
    %p167 = scmp.eq.s32.totalorder %s19, 1
    %p168 = por %p166, %p167
    %p170 = scmp.ne.s32.totalorder %s155, %s169
    %p171 = scmp.eq.s32.totalorder %s19, 0
    %p172 = por %p170, %p171
    %s173 = ssub.s32 %s13, %s20
    %p174 = scmp.eq.s32.totalorder %s173, 0
    %s176 = sadd.s32 %s175, 1
    %s177 = scalar_select %p174, %s175, %s176
    %p180 = pneg %p174
    %p181 = scmp.eq.s32.totalorder %s13, 1
    %p182 = por %p180, %p181
    %p183 = scmp.ne.s32.totalorder %s175, %s178
    %p184 = scmp.eq.s32.totalorder %s13, 0
    %p185 = por %p183, %p184
    %p186 = scmp.ne.s32.totalorder %s175, %s178
    %p187 = scmp.eq.s32.totalorder %s18, 1
    %p188 = por %p186, %p187
    %p189 = scmp.ne.s32.totalorder %s178, %s179
    %p190 = scmp.eq.s32.totalorder %s18, 0
    %p191 = por %p189, %p190
    %p192 = scmp.ne.s32.totalorder %s178, %s179
    %p193 = scmp.eq.s32.totalorder %s19, 1
    %p194 = por %p192, %p193
    %p196 = scmp.ne.s32.totalorder %s179, %s195
    %p197 = scmp.eq.s32.totalorder %s19, 0
    %p198 = por %p196, %p197
    %p199 = scmp.le.s32.totalorder 1, %s13
    %p200 = scmp.lt.s32.totalorder %s13, 3
    %p201 = pnand %p199, %p200
    %p202 = pneg %p201
    // Predicated region
    $region9: #{inverted_residual.1} parent=5 // pred_check
      _
    $region10: #{inverted_residual.1} parent=5 // pred_check_branch
      %204 = sbr.rel (%p201) target = $region12
    $region11: #{inverted_residual.1} parent=5 // pred_region
      %s205 = ssub.s32 %s13, 1
      // Predicated region
      $region13: #{inverted_residual.1} parent=11 // pred_check
        %p206 = pneg %p60
      $region14: #{inverted_residual.1} parent=11 // pred_check_branch
        %208 = sbr.rel (%p206) target = $region16
      $region15: #{inverted_residual.1} parent=11 // pred_region
        _
      $region16: #{inverted_residual.1} parent=11 // pred_fallthru
        _
      // Predicated region
      $region17: #{inverted_residual.1} parent=11 // pred_check
        %p209 = pneg %p81
      $region18: #{inverted_residual.1} parent=11 // pred_check_branch
        %211 = sbr.rel (%p209) target = $region20
      $region19: #{inverted_residual.1} parent=11 // pred_region
        _
      $region20: #{inverted_residual.1} parent=11 // pred_fallthru
        _
      // Predicated region
      $region21: #{inverted_residual.1} parent=11 // pred_check
        %p212 = pneg %p102
      $region22: #{inverted_residual.1} parent=11 // pred_check_branch
        %214 = sbr.rel (%p212) target = $region24
      $region23: #{inverted_residual.1} parent=11 // pred_region
        _
      $region24: #{inverted_residual.1} parent=11 // pred_fallthru
        _
      // Predicated region
      $region25: #{inverted_residual.1} parent=11 // pred_check
        %p215 = pneg %p123
      $region26: #{inverted_residual.1} parent=11 // pred_check_branch
        %217 = sbr.rel (%p215) target = $region28
      $region27: #{inverted_residual.1} parent=11 // pred_region
        _
      $region28: #{inverted_residual.1} parent=11 // pred_fallthru
        _
      // Predicated region
      $region29: #{inverted_residual.1} parent=11 // pred_check
        %p218 = pneg %p144
      $region30: #{inverted_residual.1} parent=11 // pred_check_branch
        %220 = sbr.rel (%p218) target = $region32
      $region31: #{inverted_residual.1} parent=11 // pred_region
        _
      $region32: #{inverted_residual.1} parent=11 // pred_fallthru
        _
      // Predicated region
      $region33: #{inverted_residual.1} parent=11 // pred_check
        %p221 = pneg %p165
      $region34: #{inverted_residual.1} parent=11 // pred_check_branch
        %223 = sbr.rel (%p221) target = $region36
      $region35: #{inverted_residual.1} parent=11 // pred_region
        _
      $region36: #{inverted_residual.1} parent=11 // pred_fallthru
        _
    $region12: #{inverted_residual.1} parent=5 // pred_fallthru
      _
    %p224 = scmp.lt.s32.totalorder %s13, 2
    // Predicated region
    $region37: #{inverted_residual.1} parent=5 // pred_check
      %p225 = pneg %p224
    $region38: #{inverted_residual.1} parent=5 // pred_check_branch
      %227 = sbr.rel (%p225) target = $region40
    $region39: #{inverted_residual.1} parent=5 // pred_region
      // Predicated region
      $region41: #{inverted_residual.1} parent=39 // pred_check
        %p228 = pneg %p33
      $region42: #{inverted_residual.1} parent=39 // pred_check_branch
        %230 = sbr.rel (%p228) target = $region44
      $region43: #{inverted_residual.1} parent=39 // pred_region
        %p231 = scmp.lt.s32.totalorder %s13, 1
        %s232 = scalar_select %p231, %s13, 1
        %s233 = smul.addr %s232, 32
        %s234 = smul.addr %s233, 8
        %s235 = scalar_lea.vmem %s0, %s234
      $region44: #{inverted_residual.1} parent=39 // pred_fallthru
        _
    $region40: #{inverted_residual.1} parent=5 // pred_fallthru
      _
    %p236 = scmp.le.s32.totalorder 1, %s13
    %p237 = scmp.lt.s32.totalorder %s13, 3
    %p238 = pnand %p236, %p237
    %p239 = pneg %p238
    // Predicated region
    $region45: #{inverted_residual.1} parent=5 // pred_check
      _
    $region46: #{inverted_residual.1} parent=5 // pred_check_branch
      %241 = sbr.rel (%p238) target = $region48
    $region47: #{inverted_residual.1} parent=5 // pred_region
      %s242 = ssub.s32 %s13, 1
      %p243 = scmp.lt.s32.totalorder %s18, 1
      %s244 = scalar_select %p243, %s18, 1
      %s245 = smul.addr %s244, 32
      %s246 = smul.addr %s245, 8
      %s247 = scalar_lea.vmem %s0, %s246
      %p248 = pneg %p39
      %p249 = pneg %p36
      %p250 = pneg %p60
      %p251 = pneg %p57
      %p252 = pneg %p81
      %p253 = pneg %p78
      %p254 = pneg %p102
      %p255 = pneg %p99
      %p256 = pneg %p123
      %p257 = pneg %p120
      %p258 = pneg %p144
      %p259 = pneg %p141
      %p260 = pneg %p165
      %p261 = pneg %p162
      %p262 = pneg %p191
      %p263 = pneg %p188
      %p264 = scmp.lt.s32.totalorder %s18, 1
      %s265 = scalar_select %p264, %s18, 1
      %s266 = smul.addr %s265, 32
      %s267 = smul.addr %s266, 8
      %s268 = scalar_lea.vmem %s7, %s267
      %p269 = scmp.lt.s32.totalorder %s18, 1
      %s270 = scalar_select %p269, %s18, 1
      %s271 = smul.addr %s270, 32
      %s272 = smul.addr %s271, 8
      %s273 = scalar_lea.vmem %s0, %s272
      %p274 = scmp.lt.s32.totalorder %s18, 1
      %s275 = scalar_select %p274, %s18, 1
      %s276 = smul.addr %s275, 32
      %s277 = smul.addr %s276, 8
      %s278 = scalar_lea.vmem %s7, %s277
      %279 = vst [vmem:[#allocation2] sm:$0xff] 0.0
      %280 = vst [vmem:[#allocation2 + $0x8] sm:$0xff] 0.0
      %281 = vst [vmem:[#allocation2 + $0x10] sm:$0x3] 0.0
      %s282 = scalar_lea.vmem [#allocation2], 408
      %283 = vst [vmem:[%s282] sm:$0xff] 0.0
      %284 = vst [vmem:[%s282 + $0x8] sm:$0xff] 0.0
      %285 = vst [vmem:[%s282 + $0x10] sm:$0x3] 0.0
      %286 = vst [vmem:[#allocation2] sm:$0x1] 0.0
      %287 = vst [vmem:[#allocation2 + $0x18] sm:$0x1] 0.0
      %288 = vst [vmem:[#allocation2 + $0x30] sm:$0x1] 0.0
      %289 = vst [vmem:[#allocation2 + $0x48] sm:$0x1] 0.0
      %290 = vst [vmem:[#allocation2 + $0x60] sm:$0x1] 0.0
      %291 = vst [vmem:[#allocation2 + $0x78] sm:$0x1] 0.0
      %292 = vst [vmem:[#allocation2 + $0x90] sm:$0x1] 0.0
      %293 = vst [vmem:[#allocation2 + $0xa8] sm:$0x1] 0.0
      %294 = vst [vmem:[#allocation2 + $0xc0] sm:$0x1] 0.0
      %295 = vst [vmem:[#allocation2 + $0xd8] sm:$0x1] 0.0
      %296 = vst [vmem:[#allocation2 + $0xf0] sm:$0x1] 0.0
      %297 = vst [vmem:[#allocation2 + $0x108] sm:$0x1] 0.0
      %298 = vst [vmem:[#allocation2 + $0x120] sm:$0x1] 0.0
      %299 = vst [vmem:[#allocation2 + $0x138] sm:$0x1] 0.0
      %300 = vst [vmem:[#allocation2 + $0x150] sm:$0x1] 0.0
      %301 = vst [vmem:[#allocation2 + $0x168] sm:$0x1] 0.0
      %302 = vst [vmem:[#allocation2 + $0x180] sm:$0x1] 0.0
      %303 = vst [vmem:[#allocation2 + $0x198] sm:$0x1] 0.0
      %304 = vst [vmem:[#allocation2 + $0x11] sm:$0x1] 0.0
      %305 = vst [vmem:[#allocation2 + $0x29] sm:$0x1] 0.0
      %306 = vst [vmem:[#allocation2 + $0x41] sm:$0x1] 0.0
      %307 = vst [vmem:[#allocation2 + $0x59] sm:$0x1] 0.0
      %308 = vst [vmem:[#allocation2 + $0x71] sm:$0x1] 0.0
      %309 = vst [vmem:[#allocation2 + $0x89] sm:$0x1] 0.0
      %310 = vst [vmem:[#allocation2 + $0xa1] sm:$0x1] 0.0
      %311 = vst [vmem:[#allocation2 + $0xb9] sm:$0x1] 0.0
      %312 = vst [vmem:[#allocation2 + $0xd1] sm:$0x1] 0.0
      %313 = vst [vmem:[#allocation2 + $0xe9] sm:$0x1] 0.0
      %314 = vst [vmem:[#allocation2 + $0x101] sm:$0x1] 0.0
      %315 = vst [vmem:[#allocation2 + $0x119] sm:$0x1] 0.0
      %316 = vst [vmem:[#allocation2 + $0x131] sm:$0x1] 0.0
      %317 = vst [vmem:[#allocation2 + $0x149] sm:$0x1] 0.0
      %318 = vst [vmem:[#allocation2 + $0x161] sm:$0x1] 0.0
      %319 = vst [vmem:[#allocation2 + $0x179] sm:$0x1] 0.0
      %320 = vst [vmem:[#allocation2 + $0x191] sm:$0x1] 0.0
      %321 = vst [vmem:[#allocation2 + $0x1a9] sm:$0x1] 0.0
      loop: start=0, step=1, limit=2
      $region49: #{inverted_residual.1} parent=47 // loop_pre_header
        _
      $region50: #{inverted_residual.1} parent=47 // loop_header
        %s323 = sphi 0, %s327
        %p324 = scmp.ge.s32.totalorder %s323, 2
      $region51: #{inverted_residual.1} parent=47 // loop_header_branch
        %326 = sbr.rel (%p324) target = $region55
      $region52: #{inverted_residual.1} parent=47 // loop_body
        %s328 = smul.u32 %s323, 8
        %s329 = smul.u32 %s328, 16
        %s330 = scalar_lea.vmem %s273, %s329
        %v331 = vld [vmem:[%s330] sm:$0xff]
        %v332 = vld [vmem:[%s330 + $0x8] sm:$0xff]
        %v333 = vld [vmem:[%s330 + $0x10] sm:$0xff]
        %v334 = vld [vmem:[%s330 + $0x18] sm:$0xff]
        %v335 = vld [vmem:[%s330 + $0x20] sm:$0xff]
        %v336 = vld [vmem:[%s330 + $0x28] sm:$0xff]
        %v337 = vld [vmem:[%s330 + $0x30] sm:$0xff]
        %v338 = vld [vmem:[%s330 + $0x38] sm:$0xff]
        %v339 = vld [vmem:[%s330 + $0x40] sm:$0xff]
        %v340 = vld [vmem:[%s330 + $0x48] sm:$0xff]
        %v341 = vld [vmem:[%s330 + $0x50] sm:$0xff]
        %v342 = vld [vmem:[%s330 + $0x58] sm:$0xff]
        %v343 = vld [vmem:[%s330 + $0x60] sm:$0xff]
        %v344 = vld [vmem:[%s330 + $0x68] sm:$0xff]
        %v345 = vld [vmem:[%s330 + $0x70] sm:$0xff]
        %v346 = vld [vmem:[%s330 + $0x78] sm:$0xff]
        %v347 = vpack.c.bf16 %v332, %v331
        %v348 = vpack.c.bf16 %v334, %v333
        %v349 = vpack.c.bf16 %v336, %v335
        %v350 = vpack.c.bf16 %v338, %v337
        %v351 = vpack.c.bf16 %v340, %v339
        %v352 = vpack.c.bf16 %v342, %v341
        %v353 = vpack.c.bf16 %v344, %v343
        %v354 = vpack.c.bf16 %v346, %v345
        %v355 = vld [vmem:[%s1] sm:$0xf]
        %v356 = vld [vmem:[%s1 + $0x4] sm:$0xf]
        %v357 = vld [vmem:[%s1 + $0x8] sm:$0xf]
        %v358 = vld [vmem:[%s1 + $0xc] sm:$0xf]
        %v359 = vld [vmem:[%s1 + $0x10] sm:$0xf]
        %v360 = vld [vmem:[%s1 + $0x14] sm:$0xf]
        %v361 = vld [vmem:[%s1 + $0x18] sm:$0xf]
        %v362 = vld [vmem:[%s1 + $0x1c] sm:$0xf]
        %v363 = vld [vmem:[%s1 + $0x20] sm:$0xf]
        %v364 = vld [vmem:[%s1 + $0x24] sm:$0xf]
        %v365 = vld [vmem:[%s1 + $0x28] sm:$0xf]
        %v366 = vld [vmem:[%s1 + $0x2c] sm:$0xf]
        %v367 = vld [vmem:[%s1 + $0x30] sm:$0xf]
        %v368 = vld [vmem:[%s1 + $0x34] sm:$0xf]
        %v369 = vld [vmem:[%s1 + $0x38] sm:$0xf]
        %v370 = vld [vmem:[%s1 + $0x3c] sm:$0xf]
        %v371 = vld [vmem:[%s2] sm:$0x1]
        %v373 = vperm.slane %v371, 0
        %v391 = vunpack.c.l.b16 %v355
        %v392 = vunpack.c.l.b16 %v356
        %v393 = vunpack.c.l.b16 %v357
        %v394 = vunpack.c.l.b16 %v358
        %v395 = vunpack.c.l.b16 %v359
        %v396 = vunpack.c.l.b16 %v360
        %v397 = vunpack.c.l.b16 %v361
        %v398 = vunpack.c.l.b16 %v362
        %v399 = vunpack.c.l.b16 %v363
        %v400 = vunpack.c.l.b16 %v364
        %v401 = vunpack.c.l.b16 %v365
        %v402 = vunpack.c.l.b16 %v366
        %v403 = vunpack.c.l.b16 %v367
        %v404 = vunpack.c.l.b16 %v368
        %v405 = vunpack.c.l.b16 %v369
        %v406 = vunpack.c.l.b16 %v370
        %v407 = vpack.c.b16 %v392, %v391
        %v408 = vpack.c.b16 %v394, %v393
        %v409 = vpack.c.b16 %v396, %v395
        %v410 = vpack.c.b16 %v398, %v397
        %v411 = vpack.c.b16 %v400, %v399
        %v412 = vpack.c.b16 %v402, %v401
        %v413 = vpack.c.b16 %v404, %v403
        %v414 = vpack.c.b16 %v406, %v405
        %423 = vmatpush.bf16.msra.mxu0 %v414
        %424 = vmatpush.bf16.msra.mxu0 %v413
        %425 = vmatpush.bf16.msra.mxu0 %v412
        %426 = vmatpush.bf16.msra.mxu0 %v411
        %427 = vmatpush.bf16.msra.mxu0 %v410
        %428 = vmatpush.bf16.msra.mxu0 %v409
        %429 = vmatpush.bf16.msra.mxu0 %v408
        %430 = vmatpush.bf16.msra.mxu0 %v407
        %431 = vmatmul.bf16.gmra.mxu0 %v347
        %v432 = vpop.f32.mrf.mxu0
        %v433 = vadd.f32 %v373, %v432
        %v434 = vpop.f32.mrf.mxu0
        %v435 = vadd.f32 %v373, %v434
        %436 = vmatmul.bf16.gmra.mxu0 %v348
        %v437 = vpop.f32.mrf.mxu0
        %v438 = vadd.f32 %v373, %v437
        %v439 = vpop.f32.mrf.mxu0
        %v440 = vadd.f32 %v373, %v439
        %441 = vmatmul.bf16.gmra.mxu0 %v349
        %v442 = vpop.f32.mrf.mxu0
        %v443 = vadd.f32 %v373, %v442
        %v444 = vpop.f32.mrf.mxu0
        %v445 = vadd.f32 %v373, %v444
        %446 = vmatmul.bf16.gmra.mxu0 %v350
        %v447 = vpop.f32.mrf.mxu0
        %v448 = vadd.f32 %v373, %v447
        %v449 = vpop.f32.mrf.mxu0
        %v450 = vadd.f32 %v373, %v449
        %451 = vmatmul.bf16.gmra.mxu0 %v351
        %v452 = vpop.f32.mrf.mxu0
        %v453 = vadd.f32 %v373, %v452
        %v454 = vpop.f32.mrf.mxu0
        %v455 = vadd.f32 %v373, %v454
        %456 = vmatmul.bf16.gmra.mxu0 %v352
        %v457 = vpop.f32.mrf.mxu0
        %v458 = vadd.f32 %v373, %v457
        %v459 = vpop.f32.mrf.mxu0
        %v460 = vadd.f32 %v373, %v459
        %461 = vmatmul.bf16.gmra.mxu0 %v353
        %v462 = vpop.f32.mrf.mxu0
        %v463 = vadd.f32 %v373, %v462
        %v464 = vpop.f32.mrf.mxu0
        %v465 = vadd.f32 %v373, %v464
        %466 = vmatmul.bf16.gmra.mxu0 %v354
        %v467 = vpop.f32.mrf.mxu0
        %v468 = vadd.f32 %v373, %v467
        %v469 = vpop.f32.mrf.mxu0
        %v470 = vadd.f32 %v373, %v469
        %471 = vdwg.mxu0
        %v472 = vmax.f32 %v433, 0.0
        %v473 = vmax.f32 %v435, 0.0
        %v474 = vmax.f32 %v438, 0.0
        %v475 = vmax.f32 %v440, 0.0
        %v476 = vmax.f32 %v443, 0.0
        %v477 = vmax.f32 %v445, 0.0
        %v478 = vmax.f32 %v448, 0.0
        %v479 = vmax.f32 %v450, 0.0
        %v480 = vmax.f32 %v453, 0.0
        %v481 = vmax.f32 %v455, 0.0
        %v482 = vmax.f32 %v458, 0.0
        %v483 = vmax.f32 %v460, 0.0
        %v484 = vmax.f32 %v463, 0.0
        %v485 = vmax.f32 %v465, 0.0
        %v486 = vmax.f32 %v468, 0.0
        %v487 = vmax.f32 %v470, 0.0
        %v488 = vmin.f32 %v472, 6.0
        %v489 = vmin.f32 %v473, 6.0
        %v490 = vmin.f32 %v474, 6.0
        %v491 = vmin.f32 %v475, 6.0
        %v492 = vmin.f32 %v476, 6.0
        %v493 = vmin.f32 %v477, 6.0
        %v494 = vmin.f32 %v478, 6.0
        %v495 = vmin.f32 %v479, 6.0
        %v496 = vmin.f32 %v480, 6.0
        %v497 = vmin.f32 %v481, 6.0
        %v498 = vmin.f32 %v482, 6.0
        %v499 = vmin.f32 %v483, 6.0
        %v500 = vmin.f32 %v484, 6.0
        %v501 = vmin.f32 %v485, 6.0
        %v502 = vmin.f32 %v486, 6.0
        %v503 = vmin.f32 %v487, 6.0
        %s504 = sadd.s32 %s328, 1
        %s505 = smul.u32 %s504, 24
        %s506 = scalar_lea.vmem [#allocation2], %s505
        %507 = vst [vmem:[%s506 + $0x1] sm:$0xff] %v488
        %508 = vst [vmem:[%s506 + $0x9] sm:$0xff] %v489
        %509 = vst [vmem:[%s506 + $0x19] sm:$0xff] %v490
        %510 = vst [vmem:[%s506 + $0x21] sm:$0xff] %v491
        %511 = vst [vmem:[%s506 + $0x31] sm:$0xff] %v492
        %512 = vst [vmem:[%s506 + $0x39] sm:$0xff] %v493
        %513 = vst [vmem:[%s506 + $0x49] sm:$0xff] %v494
        %514 = vst [vmem:[%s506 + $0x51] sm:$0xff] %v495
        %515 = vst [vmem:[%s506 + $0x61] sm:$0xff] %v496
        %516 = vst [vmem:[%s506 + $0x69] sm:$0xff] %v497
        %517 = vst [vmem:[%s506 + $0x79] sm:$0xff] %v498
        %518 = vst [vmem:[%s506 + $0x81] sm:$0xff] %v499
        %519 = vst [vmem:[%s506 + $0x91] sm:$0xff] %v500
        %520 = vst [vmem:[%s506 + $0x99] sm:$0xff] %v501
        %521 = vst [vmem:[%s506 + $0xa9] sm:$0xff] %v502
        %522 = vst [vmem:[%s506 + $0xb1] sm:$0xff] %v503
      $region53: #{inverted_residual.1} parent=47 // loop_footer
        %s327 = sadd.s32 1, %s323
      $region54: #{inverted_residual.1} parent=47 // loop_footer_branch
        %322 = sbr.rel target = $region50
      $region55: #{inverted_residual.1} parent=47 // loop_exit
        _
      loop: start=0, step=1, limit=2
      $region56: #{inverted_residual.1} parent=47 // loop_pre_header
        _
      $region57: #{inverted_residual.1} parent=47 // loop_header
        %s524 = sphi 0, %s528
        %p525 = scmp.ge.s32.totalorder %s524, 2
      $region58: #{inverted_residual.1} parent=47 // loop_header_branch
        %527 = sbr.rel (%p525) target = $region62
      $region59: #{inverted_residual.1} parent=47 // loop_body
        %s529 = smul.u32 %s524, 8
        %s530 = smul.u32 %s529, 24
        %s531 = scalar_lea.vmem [#allocation2], %s530
        %v532 = vld [vmem:[%s531] sm:$0xff]
        %v533 = vld [vmem:[%s531 + $0x8] sm:$0xff]
        %v534 = vld [vmem:[%s531 + $0x18] sm:$0xff]
        %v535 = vld [vmem:[%s531 + $0x20] sm:$0xff]
        %v536 = vld [vmem:[%s531 + $0x30] sm:$0xff]
        %v537 = vld [vmem:[%s531 + $0x38] sm:$0xff]
        %v538 = vld [vmem:[%s531 + $0x48] sm:$0xff]
        %v539 = vld [vmem:[%s531 + $0x50] sm:$0xff]
        %v540 = vld [vmem:[%s531 + $0x60] sm:$0xff]
        %v541 = vld [vmem:[%s531 + $0x68] sm:$0xff]
        %v542 = vld [vmem:[%s531 + $0x78] sm:$0xff]
        %v543 = vld [vmem:[%s531 + $0x80] sm:$0xff]
        %v544 = vld [vmem:[%s531 + $0x90] sm:$0xff]
        %v545 = vld [vmem:[%s531 + $0x98] sm:$0xff]
        %v546 = vld [vmem:[%s531 + $0xa8] sm:$0xff]
        %v547 = vld [vmem:[%s531 + $0xb0] sm:$0xff]
        %v548 = vld [vmem:[%s3] sm:$0x1]
        %v549 = vperm.slane %v548, 0
        %v550 = vmul.f32 %v532, %v549
        %v551 = vmul.f32 %v533, %v549
        %v552 = vmul.f32 %v534, %v549
        %v553 = vmul.f32 %v535, %v549
        %v554 = vmul.f32 %v536, %v549
        %v555 = vmul.f32 %v537, %v549
        %v556 = vmul.f32 %v538, %v549
        %v557 = vmul.f32 %v539, %v549
        %v558 = vmul.f32 %v540, %v549
        %v559 = vmul.f32 %v541, %v549
        %v560 = vmul.f32 %v542, %v549
        %v561 = vmul.f32 %v543, %v549
        %v562 = vmul.f32 %v544, %v549
        %v563 = vmul.f32 %v545, %v549
        %v564 = vmul.f32 %v546, %v549
        %v565 = vmul.f32 %v547, %v549
        %v566 = vadd.f32 %v550, 0.0
        %v567 = vadd.f32 %v551, 0.0
        %v568 = vadd.f32 %v552, 0.0
        %v569 = vadd.f32 %v553, 0.0
        %v570 = vadd.f32 %v554, 0.0
        %v571 = vadd.f32 %v555, 0.0
        %v572 = vadd.f32 %v556, 0.0
        %v573 = vadd.f32 %v557, 0.0
        %v574 = vadd.f32 %v558, 0.0
        %v575 = vadd.f32 %v559, 0.0
        %v576 = vadd.f32 %v560, 0.0
        %v577 = vadd.f32 %v561, 0.0
        %v578 = vadd.f32 %v562, 0.0
        %v579 = vadd.f32 %v563, 0.0
        %v580 = vadd.f32 %v564, 0.0
        %v581 = vadd.f32 %v565, 0.0
        %v582 = vld [vmem:[%s531 + $0x1] sm:$0xff]
        %v583 = vld [vmem:[%s531 + $0x9] sm:$0xff]
        %v584 = vld [vmem:[%s531 + $0x19] sm:$0xff]
        %v585 = vld [vmem:[%s531 + $0x21] sm:$0xff]
        %v586 = vld [vmem:[%s531 + $0x31] sm:$0xff]
        %v587 = vld [vmem:[%s531 + $0x39] sm:$0xff]
        %v588 = vld [vmem:[%s531 + $0x49] sm:$0xff]
        %v589 = vld [vmem:[%s531 + $0x51] sm:$0xff]
        %v590 = vld [vmem:[%s531 + $0x61] sm:$0xff]
        %v591 = vld [vmem:[%s531 + $0x69] sm:$0xff]
        %v592 = vld [vmem:[%s531 + $0x79] sm:$0xff]
        %v593 = vld [vmem:[%s531 + $0x81] sm:$0xff]
        %v594 = vld [vmem:[%s531 + $0x91] sm:$0xff]
        %v595 = vld [vmem:[%s531 + $0x99] sm:$0xff]
        %v596 = vld [vmem:[%s531 + $0xa9] sm:$0xff]
        %v597 = vld [vmem:[%s531 + $0xb1] sm:$0xff]
        %v598 = vld [vmem:[%s3 + $0x1] sm:$0x1]
        %v599 = vperm.slane %v598, 0
        %v600 = vmul.f32 %v582, %v599
        %v601 = vmul.f32 %v583, %v599
        %v602 = vmul.f32 %v584, %v599
        %v603 = vmul.f32 %v585, %v599
        %v604 = vmul.f32 %v586, %v599
        %v605 = vmul.f32 %v587, %v599
        %v606 = vmul.f32 %v588, %v599
        %v607 = vmul.f32 %v589, %v599
        %v608 = vmul.f32 %v590, %v599
        %v609 = vmul.f32 %v591, %v599
        %v610 = vmul.f32 %v592, %v599
        %v611 = vmul.f32 %v593, %v599
        %v612 = vmul.f32 %v594, %v599
        %v613 = vmul.f32 %v595, %v599
        %v614 = vmul.f32 %v596, %v599
        %v615 = vmul.f32 %v597, %v599
        %v616 = vadd.f32 %v566, %v600
        %v617 = vadd.f32 %v567, %v601
        %v618 = vadd.f32 %v568, %v602
        %v619 = vadd.f32 %v569, %v603
        %v620 = vadd.f32 %v570, %v604
        %v621 = vadd.f32 %v571, %v605
        %v622 = vadd.f32 %v572, %v606
        %v623 = vadd.f32 %v573, %v607
        %v624 = vadd.f32 %v574, %v608
        %v625 = vadd.f32 %v575, %v609
        %v626 = vadd.f32 %v576, %v610
        %v627 = vadd.f32 %v577, %v611
        %v628 = vadd.f32 %v578, %v612
        %v629 = vadd.f32 %v579, %v613
        %v630 = vadd.f32 %v580, %v614
        %v631 = vadd.f32 %v581, %v615
        %v632 = vld [vmem:[%s531 + $0x2] sm:$0xff]
        %v633 = vld [vmem:[%s531 + $0xa] sm:$0xff]
        %v634 = vld [vmem:[%s531 + $0x1a] sm:$0xff]
        %v635 = vld [vmem:[%s531 + $0x22] sm:$0xff]
        %v636 = vld [vmem:[%s531 + $0x32] sm:$0xff]
        %v637 = vld [vmem:[%s531 + $0x3a] sm:$0xff]
        %v638 = vld [vmem:[%s531 + $0x4a] sm:$0xff]
        %v639 = vld [vmem:[%s531 + $0x52] sm:$0xff]
        %v640 = vld [vmem:[%s531 + $0x62] sm:$0xff]
        %v641 = vld [vmem:[%s531 + $0x6a] sm:$0xff]
        %v642 = vld [vmem:[%s531 + $0x7a] sm:$0xff]
        %v643 = vld [vmem:[%s531 + $0x82] sm:$0xff]
        %v644 = vld [vmem:[%s531 + $0x92] sm:$0xff]
        %v645 = vld [vmem:[%s531 + $0x9a] sm:$0xff]
        %v646 = vld [vmem:[%s531 + $0xaa] sm:$0xff]
        %v647 = vld [vmem:[%s531 + $0xb2] sm:$0xff]
        %v648 = vld [vmem:[%s3 + $0x2] sm:$0x1]
        %v649 = vperm.slane %v648, 0
        %v650 = vmul.f32 %v632, %v649
        %v651 = vmul.f32 %v633, %v649
        %v652 = vmul.f32 %v634, %v649
        %v653 = vmul.f32 %v635, %v649
        %v654 = vmul.f32 %v636, %v649
        %v655 = vmul.f32 %v637, %v649
        %v656 = vmul.f32 %v638, %v649
        %v657 = vmul.f32 %v639, %v649
        %v658 = vmul.f32 %v640, %v649
        %v659 = vmul.f32 %v641, %v649
        %v660 = vmul.f32 %v642, %v649
        %v661 = vmul.f32 %v643, %v649
        %v662 = vmul.f32 %v644, %v649
        %v663 = vmul.f32 %v645, %v649
        %v664 = vmul.f32 %v646, %v649
        %v665 = vmul.f32 %v647, %v649
        %v666 = vadd.f32 %v616, %v650
        %v667 = vadd.f32 %v617, %v651
        %v668 = vadd.f32 %v618, %v652
        %v669 = vadd.f32 %v619, %v653
        %v670 = vadd.f32 %v620, %v654
        %v671 = vadd.f32 %v621, %v655
        %v672 = vadd.f32 %v622, %v656
        %v673 = vadd.f32 %v623, %v657
        %v674 = vadd.f32 %v624, %v658
        %v675 = vadd.f32 %v625, %v659
        %v676 = vadd.f32 %v626, %v660
        %v677 = vadd.f32 %v627, %v661
        %v678 = vadd.f32 %v628, %v662
        %v679 = vadd.f32 %v629, %v663
        %v680 = vadd.f32 %v630, %v664
        %v681 = vadd.f32 %v631, %v665
        %s682 = sadd.s32 %s529, 1
        %s683 = smul.u32 %s682, 24
        %s684 = scalar_lea.vmem [#allocation2], %s683
        %v685 = vld [vmem:[%s684] sm:$0xff]
        %v686 = vld [vmem:[%s684 + $0x8] sm:$0xff]
        %v687 = vld [vmem:[%s684 + $0x18] sm:$0xff]
        %v688 = vld [vmem:[%s684 + $0x20] sm:$0xff]
        %v689 = vld [vmem:[%s684 + $0x30] sm:$0xff]
        %v690 = vld [vmem:[%s684 + $0x38] sm:$0xff]
        %v691 = vld [vmem:[%s684 + $0x48] sm:$0xff]
        %v692 = vld [vmem:[%s684 + $0x50] sm:$0xff]
        %v693 = vld [vmem:[%s684 + $0x60] sm:$0xff]
        %v694 = vld [vmem:[%s684 + $0x68] sm:$0xff]
        %v695 = vld [vmem:[%s684 + $0x78] sm:$0xff]
        %v696 = vld [vmem:[%s684 + $0x80] sm:$0xff]
        %v697 = vld [vmem:[%s684 + $0x90] sm:$0xff]
        %v698 = vld [vmem:[%s684 + $0x98] sm:$0xff]
        %v699 = vld [vmem:[%s684 + $0xa8] sm:$0xff]
        %v700 = vld [vmem:[%s684 + $0xb0] sm:$0xff]
        %v701 = vld [vmem:[%s3 + $0x3] sm:$0x1]
        %v702 = vperm.slane %v701, 0
        %v703 = vmul.f32 %v685, %v702
        %v704 = vmul.f32 %v686, %v702
        %v705 = vmul.f32 %v687, %v702
        %v706 = vmul.f32 %v688, %v702
        %v707 = vmul.f32 %v689, %v702
        %v708 = vmul.f32 %v690, %v702
        %v709 = vmul.f32 %v691, %v702
        %v710 = vmul.f32 %v692, %v702
        %v711 = vmul.f32 %v693, %v702
        %v712 = vmul.f32 %v694, %v702
        %v713 = vmul.f32 %v695, %v702
        %v714 = vmul.f32 %v696, %v702
        %v715 = vmul.f32 %v697, %v702
        %v716 = vmul.f32 %v698, %v702
        %v717 = vmul.f32 %v699, %v702
        %v718 = vmul.f32 %v700, %v702
        %v719 = vadd.f32 %v666, %v703
        %v720 = vadd.f32 %v667, %v704
        %v721 = vadd.f32 %v668, %v705
        %v722 = vadd.f32 %v669, %v706
        %v723 = vadd.f32 %v670, %v707
        %v724 = vadd.f32 %v671, %v708
        %v725 = vadd.f32 %v672, %v709
        %v726 = vadd.f32 %v673, %v710
        %v727 = vadd.f32 %v674, %v711
        %v728 = vadd.f32 %v675, %v712
        %v729 = vadd.f32 %v676, %v713
        %v730 = vadd.f32 %v677, %v714
        %v731 = vadd.f32 %v678, %v715
        %v732 = vadd.f32 %v679, %v716
        %v733 = vadd.f32 %v680, %v717
        %v734 = vadd.f32 %v681, %v718
        %v735 = vld [vmem:[%s684 + $0x1] sm:$0xff]
        %v736 = vld [vmem:[%s684 + $0x9] sm:$0xff]
        %v737 = vld [vmem:[%s684 + $0x19] sm:$0xff]
        %v738 = vld [vmem:[%s684 + $0x21] sm:$0xff]
        %v739 = vld [vmem:[%s684 + $0x31] sm:$0xff]
        %v740 = vld [vmem:[%s684 + $0x39] sm:$0xff]
        %v741 = vld [vmem:[%s684 + $0x49] sm:$0xff]
        %v742 = vld [vmem:[%s684 + $0x51] sm:$0xff]
        %v743 = vld [vmem:[%s684 + $0x61] sm:$0xff]
        %v744 = vld [vmem:[%s684 + $0x69] sm:$0xff]
        %v745 = vld [vmem:[%s684 + $0x79] sm:$0xff]
        %v746 = vld [vmem:[%s684 + $0x81] sm:$0xff]
        %v747 = vld [vmem:[%s684 + $0x91] sm:$0xff]
        %v748 = vld [vmem:[%s684 + $0x99] sm:$0xff]
        %v749 = vld [vmem:[%s684 + $0xa9] sm:$0xff]
        %v750 = vld [vmem:[%s684 + $0xb1] sm:$0xff]
        %v751 = vld [vmem:[%s3 + $0x4] sm:$0x1]
        %v752 = vperm.slane %v751, 0
        %v753 = vmul.f32 %v735, %v752
        %v754 = vmul.f32 %v736, %v752
        %v755 = vmul.f32 %v737, %v752
        %v756 = vmul.f32 %v738, %v752
        %v757 = vmul.f32 %v739, %v752
        %v758 = vmul.f32 %v740, %v752
        %v759 = vmul.f32 %v741, %v752
        %v760 = vmul.f32 %v742, %v752
        %v761 = vmul.f32 %v743, %v752
        %v762 = vmul.f32 %v744, %v752
        %v763 = vmul.f32 %v745, %v752
        %v764 = vmul.f32 %v746, %v752
        %v765 = vmul.f32 %v747, %v752
        %v766 = vmul.f32 %v748, %v752
        %v767 = vmul.f32 %v749, %v752
        %v768 = vmul.f32 %v750, %v752
        %v769 = vadd.f32 %v719, %v753
        %v770 = vadd.f32 %v720, %v754
        %v771 = vadd.f32 %v721, %v755
        %v772 = vadd.f32 %v722, %v756
        %v773 = vadd.f32 %v723, %v757
        %v774 = vadd.f32 %v724, %v758
        %v775 = vadd.f32 %v725, %v759
        %v776 = vadd.f32 %v726, %v760
        %v777 = vadd.f32 %v727, %v761
        %v778 = vadd.f32 %v728, %v762
        %v779 = vadd.f32 %v729, %v763
        %v780 = vadd.f32 %v730, %v764
        %v781 = vadd.f32 %v731, %v765
        %v782 = vadd.f32 %v732, %v766
        %v783 = vadd.f32 %v733, %v767
        %v784 = vadd.f32 %v734, %v768
        %v785 = vld [vmem:[%s684 + $0x2] sm:$0xff]
        %v786 = vld [vmem:[%s684 + $0xa] sm:$0xff]
        %v787 = vld [vmem:[%s684 + $0x1a] sm:$0xff]
        %v788 = vld [vmem:[%s684 + $0x22] sm:$0xff]
        %v789 = vld [vmem:[%s684 + $0x32] sm:$0xff]
        %v790 = vld [vmem:[%s684 + $0x3a] sm:$0xff]
        %v791 = vld [vmem:[%s684 + $0x4a] sm:$0xff]
        %v792 = vld [vmem:[%s684 + $0x52] sm:$0xff]
        %v793 = vld [vmem:[%s684 + $0x62] sm:$0xff]
        %v794 = vld [vmem:[%s684 + $0x6a] sm:$0xff]
        %v795 = vld [vmem:[%s684 + $0x7a] sm:$0xff]
        %v796 = vld [vmem:[%s684 + $0x82] sm:$0xff]
        %v797 = vld [vmem:[%s684 + $0x92] sm:$0xff]
        %v798 = vld [vmem:[%s684 + $0x9a] sm:$0xff]
        %v799 = vld [vmem:[%s684 + $0xaa] sm:$0xff]
        %v800 = vld [vmem:[%s684 + $0xb2] sm:$0xff]
        %v801 = vld [vmem:[%s3 + $0x5] sm:$0x1]
        %v802 = vperm.slane %v801, 0
        %v803 = vmul.f32 %v785, %v802
        %v804 = vmul.f32 %v786, %v802
        %v805 = vmul.f32 %v787, %v802
        %v806 = vmul.f32 %v788, %v802
        %v807 = vmul.f32 %v789, %v802
        %v808 = vmul.f32 %v790, %v802
        %v809 = vmul.f32 %v791, %v802
        %v810 = vmul.f32 %v792, %v802
        %v811 = vmul.f32 %v793, %v802
        %v812 = vmul.f32 %v794, %v802
        %v813 = vmul.f32 %v795, %v802
        %v814 = vmul.f32 %v796, %v802
        %v815 = vmul.f32 %v797, %v802
        %v816 = vmul.f32 %v798, %v802
        %v817 = vmul.f32 %v799, %v802
        %v818 = vmul.f32 %v800, %v802
        %v819 = vadd.f32 %v769, %v803
        %v820 = vadd.f32 %v770, %v804
        %v821 = vadd.f32 %v771, %v805
        %v822 = vadd.f32 %v772, %v806
        %v823 = vadd.f32 %v773, %v807
        %v824 = vadd.f32 %v774, %v808
        %v825 = vadd.f32 %v775, %v809
        %v826 = vadd.f32 %v776, %v810
        %v827 = vadd.f32 %v777, %v811
        %v828 = vadd.f32 %v778, %v812
        %v829 = vadd.f32 %v779, %v813
        %v830 = vadd.f32 %v780, %v814
        %v831 = vadd.f32 %v781, %v815
        %v832 = vadd.f32 %v782, %v816
        %v833 = vadd.f32 %v783, %v817
        %v834 = vadd.f32 %v784, %v818
        %s835 = sadd.s32 %s529, 2
        %s836 = smul.u32 %s835, 24
        %s837 = scalar_lea.vmem [#allocation2], %s836
        %v838 = vld [vmem:[%s837] sm:$0xff]
        %v839 = vld [vmem:[%s837 + $0x8] sm:$0xff]
        %v840 = vld [vmem:[%s837 + $0x18] sm:$0xff]
        %v841 = vld [vmem:[%s837 + $0x20] sm:$0xff]
        %v842 = vld [vmem:[%s837 + $0x30] sm:$0xff]
        %v843 = vld [vmem:[%s837 + $0x38] sm:$0xff]
        %v844 = vld [vmem:[%s837 + $0x48] sm:$0xff]
        %v845 = vld [vmem:[%s837 + $0x50] sm:$0xff]
        %v846 = vld [vmem:[%s837 + $0x60] sm:$0xff]
        %v847 = vld [vmem:[%s837 + $0x68] sm:$0xff]
        %v848 = vld [vmem:[%s837 + $0x78] sm:$0xff]
        %v849 = vld [vmem:[%s837 + $0x80] sm:$0xff]
        %v850 = vld [vmem:[%s837 + $0x90] sm:$0xff]
        %v851 = vld [vmem:[%s837 + $0x98] sm:$0xff]
        %v852 = vld [vmem:[%s837 + $0xa8] sm:$0xff]
        %v853 = vld [vmem:[%s837 + $0xb0] sm:$0xff]
        %v854 = vld [vmem:[%s3 + $0x6] sm:$0x1]
        %v855 = vperm.slane %v854, 0
        %v856 = vmul.f32 %v838, %v855
        %v857 = vmul.f32 %v839, %v855
        %v858 = vmul.f32 %v840, %v855
        %v859 = vmul.f32 %v841, %v855
        %v860 = vmul.f32 %v842, %v855
        %v861 = vmul.f32 %v843, %v855
        %v862 = vmul.f32 %v844, %v855
        %v863 = vmul.f32 %v845, %v855
        %v864 = vmul.f32 %v846, %v855
        %v865 = vmul.f32 %v847, %v855
        %v866 = vmul.f32 %v848, %v855
        %v867 = vmul.f32 %v849, %v855
        %v868 = vmul.f32 %v850, %v855
        %v869 = vmul.f32 %v851, %v855
        %v870 = vmul.f32 %v852, %v855
        %v871 = vmul.f32 %v853, %v855
        %v872 = vadd.f32 %v819, %v856
        %v873 = vadd.f32 %v820, %v857
        %v874 = vadd.f32 %v821, %v858
        %v875 = vadd.f32 %v822, %v859
        %v876 = vadd.f32 %v823, %v860
        %v877 = vadd.f32 %v824, %v861
        %v878 = vadd.f32 %v825, %v862
        %v879 = vadd.f32 %v826, %v863
        %v880 = vadd.f32 %v827, %v864
        %v881 = vadd.f32 %v828, %v865
        %v882 = vadd.f32 %v829, %v866
        %v883 = vadd.f32 %v830, %v867
        %v884 = vadd.f32 %v831, %v868
        %v885 = vadd.f32 %v832, %v869
        %v886 = vadd.f32 %v833, %v870
        %v887 = vadd.f32 %v834, %v871
        %v888 = vld [vmem:[%s837 + $0x1] sm:$0xff]
        %v889 = vld [vmem:[%s837 + $0x9] sm:$0xff]
        %v890 = vld [vmem:[%s837 + $0x19] sm:$0xff]
        %v891 = vld [vmem:[%s837 + $0x21] sm:$0xff]
        %v892 = vld [vmem:[%s837 + $0x31] sm:$0xff]
        %v893 = vld [vmem:[%s837 + $0x39] sm:$0xff]
        %v894 = vld [vmem:[%s837 + $0x49] sm:$0xff]
        %v895 = vld [vmem:[%s837 + $0x51] sm:$0xff]
        %v896 = vld [vmem:[%s837 + $0x61] sm:$0xff]
        %v897 = vld [vmem:[%s837 + $0x69] sm:$0xff]
        %v898 = vld [vmem:[%s837 + $0x79] sm:$0xff]
        %v899 = vld [vmem:[%s837 + $0x81] sm:$0xff]
        %v900 = vld [vmem:[%s837 + $0x91] sm:$0xff]
        %v901 = vld [vmem:[%s837 + $0x99] sm:$0xff]
        %v902 = vld [vmem:[%s837 + $0xa9] sm:$0xff]
        %v903 = vld [vmem:[%s837 + $0xb1] sm:$0xff]
        %v904 = vld [vmem:[%s3 + $0x7] sm:$0x1]
        %v905 = vperm.slane %v904, 0
        %v906 = vmul.f32 %v888, %v905
        %v907 = vmul.f32 %v889, %v905
        %v908 = vmul.f32 %v890, %v905
        %v909 = vmul.f32 %v891, %v905
        %v910 = vmul.f32 %v892, %v905
        %v911 = vmul.f32 %v893, %v905
        %v912 = vmul.f32 %v894, %v905
        %v913 = vmul.f32 %v895, %v905
        %v914 = vmul.f32 %v896, %v905
        %v915 = vmul.f32 %v897, %v905
        %v916 = vmul.f32 %v898, %v905
        %v917 = vmul.f32 %v899, %v905
        %v918 = vmul.f32 %v900, %v905
        %v919 = vmul.f32 %v901, %v905
        %v920 = vmul.f32 %v902, %v905
        %v921 = vmul.f32 %v903, %v905
        %v922 = vadd.f32 %v872, %v906
        %v923 = vadd.f32 %v873, %v907
        %v924 = vadd.f32 %v874, %v908
        %v925 = vadd.f32 %v875, %v909
        %v926 = vadd.f32 %v876, %v910
        %v927 = vadd.f32 %v877, %v911
        %v928 = vadd.f32 %v878, %v912
        %v929 = vadd.f32 %v879, %v913
        %v930 = vadd.f32 %v880, %v914
        %v931 = vadd.f32 %v881, %v915
        %v932 = vadd.f32 %v882, %v916
        %v933 = vadd.f32 %v883, %v917
        %v934 = vadd.f32 %v884, %v918
        %v935 = vadd.f32 %v885, %v919
        %v936 = vadd.f32 %v886, %v920
        %v937 = vadd.f32 %v887, %v921
        %v938 = vld [vmem:[%s837 + $0x2] sm:$0xff]
        %v939 = vld [vmem:[%s837 + $0xa] sm:$0xff]
        %v940 = vld [vmem:[%s837 + $0x1a] sm:$0xff]
        %v941 = vld [vmem:[%s837 + $0x22] sm:$0xff]
        %v942 = vld [vmem:[%s837 + $0x32] sm:$0xff]
        %v943 = vld [vmem:[%s837 + $0x3a] sm:$0xff]
        %v944 = vld [vmem:[%s837 + $0x4a] sm:$0xff]
        %v945 = vld [vmem:[%s837 + $0x52] sm:$0xff]
        %v946 = vld [vmem:[%s837 + $0x62] sm:$0xff]
        %v947 = vld [vmem:[%s837 + $0x6a] sm:$0xff]
        %v948 = vld [vmem:[%s837 + $0x7a] sm:$0xff]
        %v949 = vld [vmem:[%s837 + $0x82] sm:$0xff]
        %v950 = vld [vmem:[%s837 + $0x92] sm:$0xff]
        %v951 = vld [vmem:[%s837 + $0x9a] sm:$0xff]
        %v952 = vld [vmem:[%s837 + $0xaa] sm:$0xff]
        %v953 = vld [vmem:[%s837 + $0xb2] sm:$0xff]
        %v954 = vld [vmem:[%s3 + $0x8] sm:$0x1]
        %v955 = vperm.slane %v954, 0
        %v956 = vmul.f32 %v938, %v955
        %v957 = vmul.f32 %v939, %v955
        %v958 = vmul.f32 %v940, %v955
        %v959 = vmul.f32 %v941, %v955
        %v960 = vmul.f32 %v942, %v955
        %v961 = vmul.f32 %v943, %v955
        %v962 = vmul.f32 %v944, %v955
        %v963 = vmul.f32 %v945, %v955
        %v964 = vmul.f32 %v946, %v955
        %v965 = vmul.f32 %v947, %v955
        %v966 = vmul.f32 %v948, %v955
        %v967 = vmul.f32 %v949, %v955
        %v968 = vmul.f32 %v950, %v955
        %v969 = vmul.f32 %v951, %v955
        %v970 = vmul.f32 %v952, %v955
        %v971 = vmul.f32 %v953, %v955
        %v972 = vadd.f32 %v922, %v956
        %v973 = vadd.f32 %v923, %v957
        %v974 = vadd.f32 %v924, %v958
        %v975 = vadd.f32 %v925, %v959
        %v976 = vadd.f32 %v926, %v960
        %v977 = vadd.f32 %v927, %v961
        %v978 = vadd.f32 %v928, %v962
        %v979 = vadd.f32 %v929, %v963
        %v980 = vadd.f32 %v930, %v964
        %v981 = vadd.f32 %v931, %v965
        %v982 = vadd.f32 %v932, %v966
        %v983 = vadd.f32 %v933, %v967
        %v984 = vadd.f32 %v934, %v968
        %v985 = vadd.f32 %v935, %v969
        %v986 = vadd.f32 %v936, %v970
        %v987 = vadd.f32 %v937, %v971
        %v988 = vld [vmem:[%s4] sm:$0x1]
        %v990 = vperm.slane %v988, 0
        %v992 = vadd.f32 %v972, %v990
        %v993 = vadd.f32 %v973, %v990
        %v994 = vadd.f32 %v974, %v990
        %v995 = vadd.f32 %v975, %v990
        %v996 = vadd.f32 %v976, %v990
        %v997 = vadd.f32 %v977, %v990
        %v998 = vadd.f32 %v978, %v990
        %v999 = vadd.f32 %v979, %v990
        %v1000 = vadd.f32 %v980, %v990
        %v1001 = vadd.f32 %v981, %v990
        %v1002 = vadd.f32 %v982, %v990
        %v1003 = vadd.f32 %v983, %v990
        %v1004 = vadd.f32 %v984, %v990
        %v1005 = vadd.f32 %v985, %v990
        %v1006 = vadd.f32 %v986, %v990
        %v1007 = vadd.f32 %v987, %v990
        %v1008 = vmax.f32 %v992, 0.0
        %v1009 = vmax.f32 %v993, 0.0
        %v1010 = vmax.f32 %v994, 0.0
        %v1011 = vmax.f32 %v995, 0.0
        %v1012 = vmax.f32 %v996, 0.0
        %v1013 = vmax.f32 %v997, 0.0
        %v1014 = vmax.f32 %v998, 0.0
        %v1015 = vmax.f32 %v999, 0.0
        %v1016 = vmax.f32 %v1000, 0.0
        %v1017 = vmax.f32 %v1001, 0.0
        %v1018 = vmax.f32 %v1002, 0.0
        %v1019 = vmax.f32 %v1003, 0.0
        %v1020 = vmax.f32 %v1004, 0.0
        %v1021 = vmax.f32 %v1005, 0.0
        %v1022 = vmax.f32 %v1006, 0.0
        %v1023 = vmax.f32 %v1007, 0.0
        %v1024 = vmin.f32 %v1008, 6.0
        %v1025 = vmin.f32 %v1009, 6.0
        %v1026 = vmin.f32 %v1010, 6.0
        %v1027 = vmin.f32 %v1011, 6.0
        %v1028 = vmin.f32 %v1012, 6.0
        %v1029 = vmin.f32 %v1013, 6.0
        %v1030 = vmin.f32 %v1014, 6.0
        %v1031 = vmin.f32 %v1015, 6.0
        %v1032 = vmin.f32 %v1016, 6.0
        %v1033 = vmin.f32 %v1017, 6.0
        %v1034 = vmin.f32 %v1018, 6.0
        %v1035 = vmin.f32 %v1019, 6.0
        %v1036 = vmin.f32 %v1020, 6.0
        %v1037 = vmin.f32 %v1021, 6.0
        %v1038 = vmin.f32 %v1022, 6.0
        %v1039 = vmin.f32 %v1023, 6.0
        %v1040 = vpack.c.bf16 %v1025, %v1024
        %v1041 = vpack.c.bf16 %v1027, %v1026
        %v1042 = vpack.c.bf16 %v1029, %v1028
        %v1043 = vpack.c.bf16 %v1031, %v1030
        %v1044 = vpack.c.bf16 %v1033, %v1032
        %v1045 = vpack.c.bf16 %v1035, %v1034
        %v1046 = vpack.c.bf16 %v1037, %v1036
        %v1047 = vpack.c.bf16 %v1039, %v1038
        %v1048 = vld [vmem:[%s5] sm:$0xf]
        %v1049 = vld [vmem:[%s5 + $0x4] sm:$0xf]
        %v1050 = vld [vmem:[%s5 + $0x8] sm:$0xf]
        %v1051 = vld [vmem:[%s5 + $0xc] sm:$0xf]
        %v1052 = vld [vmem:[%s5 + $0x10] sm:$0xf]
        %v1053 = vld [vmem:[%s5 + $0x14] sm:$0xf]
        %v1054 = vld [vmem:[%s5 + $0x18] sm:$0xf]
        %v1055 = vld [vmem:[%s5 + $0x1c] sm:$0xf]
        %v1056 = vld [vmem:[%s5 + $0x20] sm:$0xf]
        %v1057 = vld [vmem:[%s5 + $0x24] sm:$0xf]
        %v1058 = vld [vmem:[%s5 + $0x28] sm:$0xf]
        %v1059 = vld [vmem:[%s5 + $0x2c] sm:$0xf]
        %v1060 = vld [vmem:[%s5 + $0x30] sm:$0xf]
        %v1061 = vld [vmem:[%s5 + $0x34] sm:$0xf]
        %v1062 = vld [vmem:[%s5 + $0x38] sm:$0xf]
        %v1063 = vld [vmem:[%s5 + $0x3c] sm:$0xf]
        %v1064 = vld [vmem:[%s6] sm:$0x1]
        %v1066 = vperm.slane %v1064, 0
        %v1084 = vunpack.c.l.b16 %v1048
        %v1085 = vunpack.c.l.b16 %v1049
        %v1086 = vunpack.c.l.b16 %v1050
        %v1087 = vunpack.c.l.b16 %v1051
        %v1088 = vunpack.c.l.b16 %v1052
        %v1089 = vunpack.c.l.b16 %v1053
        %v1090 = vunpack.c.l.b16 %v1054
        %v1091 = vunpack.c.l.b16 %v1055
        %v1092 = vunpack.c.l.b16 %v1056
        %v1093 = vunpack.c.l.b16 %v1057
        %v1094 = vunpack.c.l.b16 %v1058
        %v1095 = vunpack.c.l.b16 %v1059
        %v1096 = vunpack.c.l.b16 %v1060
        %v1097 = vunpack.c.l.b16 %v1061
        %v1098 = vunpack.c.l.b16 %v1062
        %v1099 = vunpack.c.l.b16 %v1063
        %v1100 = vpack.c.b16 %v1085, %v1084
        %v1101 = vpack.c.b16 %v1087, %v1086
        %v1102 = vpack.c.b16 %v1089, %v1088
        %v1103 = vpack.c.b16 %v1091, %v1090
        %v1104 = vpack.c.b16 %v1093, %v1092
        %v1105 = vpack.c.b16 %v1095, %v1094
        %v1106 = vpack.c.b16 %v1097, %v1096
        %v1107 = vpack.c.b16 %v1099, %v1098
        %1116 = vmatpush.bf16.msra.mxu0 %v1107
        %1117 = vmatpush.bf16.msra.mxu0 %v1106
        %1118 = vmatpush.bf16.msra.mxu0 %v1105
        %1119 = vmatpush.bf16.msra.mxu0 %v1104
        %1120 = vmatpush.bf16.msra.mxu0 %v1103
        %1121 = vmatpush.bf16.msra.mxu0 %v1102
        %1122 = vmatpush.bf16.msra.mxu0 %v1101
        %1123 = vmatpush.bf16.msra.mxu0 %v1100
        %1124 = vmatmul.bf16.gmra.mxu0 %v1040
        %v1125 = vpop.f32.mrf.mxu0
        %v1126 = vadd.f32 %v1066, %v1125
        %v1127 = vpop.f32.mrf.mxu0
        %v1128 = vadd.f32 %v1066, %v1127
        %1129 = vmatmul.bf16.gmra.mxu0 %v1041
        %v1130 = vpop.f32.mrf.mxu0
        %v1131 = vadd.f32 %v1066, %v1130
        %v1132 = vpop.f32.mrf.mxu0
        %v1133 = vadd.f32 %v1066, %v1132
        %1134 = vmatmul.bf16.gmra.mxu0 %v1042
        %v1135 = vpop.f32.mrf.mxu0
        %v1136 = vadd.f32 %v1066, %v1135
        %v1137 = vpop.f32.mrf.mxu0
        %v1138 = vadd.f32 %v1066, %v1137
        %1139 = vmatmul.bf16.gmra.mxu0 %v1043
        %v1140 = vpop.f32.mrf.mxu0
        %v1141 = vadd.f32 %v1066, %v1140
        %v1142 = vpop.f32.mrf.mxu0
        %v1143 = vadd.f32 %v1066, %v1142
        %1144 = vmatmul.bf16.gmra.mxu0 %v1044
        %v1145 = vpop.f32.mrf.mxu0
        %v1146 = vadd.f32 %v1066, %v1145
        %v1147 = vpop.f32.mrf.mxu0
        %v1148 = vadd.f32 %v1066, %v1147
        %1149 = vmatmul.bf16.gmra.mxu0 %v1045
        %v1150 = vpop.f32.mrf.mxu0
        %v1151 = vadd.f32 %v1066, %v1150
        %v1152 = vpop.f32.mrf.mxu0
        %v1153 = vadd.f32 %v1066, %v1152
        %1154 = vmatmul.bf16.gmra.mxu0 %v1046
        %v1155 = vpop.f32.mrf.mxu0
        %v1156 = vadd.f32 %v1066, %v1155
        %v1157 = vpop.f32.mrf.mxu0
        %v1158 = vadd.f32 %v1066, %v1157
        %1159 = vmatmul.bf16.gmra.mxu0 %v1047
        %v1160 = vpop.f32.mrf.mxu0
        %v1161 = vadd.f32 %v1066, %v1160
        %v1162 = vpop.f32.mrf.mxu0
        %v1163 = vadd.f32 %v1066, %v1162
        %1164 = vdwg.mxu0
        %s1165 = smul.u32 %s529, 16
        %s1166 = scalar_lea.vmem %s273, %s1165
        %v1167 = vld [vmem:[%s1166] sm:$0xff]
        %v1168 = vld [vmem:[%s1166 + $0x8] sm:$0xff]
        %v1169 = vld [vmem:[%s1166 + $0x10] sm:$0xff]
        %v1170 = vld [vmem:[%s1166 + $0x18] sm:$0xff]
        %v1171 = vld [vmem:[%s1166 + $0x20] sm:$0xff]
        %v1172 = vld [vmem:[%s1166 + $0x28] sm:$0xff]
        %v1173 = vld [vmem:[%s1166 + $0x30] sm:$0xff]
        %v1174 = vld [vmem:[%s1166 + $0x38] sm:$0xff]
        %v1175 = vld [vmem:[%s1166 + $0x40] sm:$0xff]
        %v1176 = vld [vmem:[%s1166 + $0x48] sm:$0xff]
        %v1177 = vld [vmem:[%s1166 + $0x50] sm:$0xff]
        %v1178 = vld [vmem:[%s1166 + $0x58] sm:$0xff]
        %v1179 = vld [vmem:[%s1166 + $0x60] sm:$0xff]
        %v1180 = vld [vmem:[%s1166 + $0x68] sm:$0xff]
        %v1181 = vld [vmem:[%s1166 + $0x70] sm:$0xff]
        %v1182 = vld [vmem:[%s1166 + $0x78] sm:$0xff]
        %v1183 = vadd.f32 %v1126, %v1167
        %v1184 = vadd.f32 %v1128, %v1168
        %v1185 = vadd.f32 %v1131, %v1169
        %v1186 = vadd.f32 %v1133, %v1170
        %v1187 = vadd.f32 %v1136, %v1171
        %v1188 = vadd.f32 %v1138, %v1172
        %v1189 = vadd.f32 %v1141, %v1173
        %v1190 = vadd.f32 %v1143, %v1174
        %v1191 = vadd.f32 %v1146, %v1175
        %v1192 = vadd.f32 %v1148, %v1176
        %v1193 = vadd.f32 %v1151, %v1177
        %v1194 = vadd.f32 %v1153, %v1178
        %v1195 = vadd.f32 %v1156, %v1179
        %v1196 = vadd.f32 %v1158, %v1180
        %v1197 = vadd.f32 %v1161, %v1181
        %v1198 = vadd.f32 %v1163, %v1182
        %s1199 = scalar_lea.vmem %s278, %s1165
        %1200 = vst [vmem:[%s1199] sm:$0xff] %v1183
        %1201 = vst [vmem:[%s1199 + $0x8] sm:$0xff] %v1184
        %1202 = vst [vmem:[%s1199 + $0x10] sm:$0xff] %v1185
        %1203 = vst [vmem:[%s1199 + $0x18] sm:$0xff] %v1186
        %1204 = vst [vmem:[%s1199 + $0x20] sm:$0xff] %v1187
        %1205 = vst [vmem:[%s1199 + $0x28] sm:$0xff] %v1188
        %1206 = vst [vmem:[%s1199 + $0x30] sm:$0xff] %v1189
        %1207 = vst [vmem:[%s1199 + $0x38] sm:$0xff] %v1190
        %1208 = vst [vmem:[%s1199 + $0x40] sm:$0xff] %v1191
        %1209 = vst [vmem:[%s1199 + $0x48] sm:$0xff] %v1192
        %1210 = vst [vmem:[%s1199 + $0x50] sm:$0xff] %v1193
        %1211 = vst [vmem:[%s1199 + $0x58] sm:$0xff] %v1194
        %1212 = vst [vmem:[%s1199 + $0x60] sm:$0xff] %v1195
        %1213 = vst [vmem:[%s1199 + $0x68] sm:$0xff] %v1196
        %1214 = vst [vmem:[%s1199 + $0x70] sm:$0xff] %v1197
        %1215 = vst [vmem:[%s1199 + $0x78] sm:$0xff] %v1198
      $region60: #{inverted_residual.1} parent=47 // loop_footer
        %s528 = sadd.s32 1, %s524
      $region61: #{inverted_residual.1} parent=47 // loop_footer_branch
        %523 = sbr.rel target = $region57
      $region62: #{inverted_residual.1} parent=47 // loop_exit
        _
      %p1216 = scmp.lt.s32.totalorder %s18, 1
      %s1217 = scalar_select %p1216, %s18, 1
      %s1218 = smul.addr %s1217, 32
      %s1219 = smul.addr %s1218, 8
      %s1220 = scalar_lea.vmem %s7, %s1219
      // Predicated region
      $region63: #{inverted_residual.1} parent=47 // pred_check
        %p1221 = pneg %p188
      $region64: #{inverted_residual.1} parent=47 // pred_check_branch
        %1223 = sbr.rel (%p1221) target = $region66
      $region65: #{inverted_residual.1} parent=47 // pred_region
        _
      $region66: #{inverted_residual.1} parent=47 // pred_fallthru
        _
    $region48: #{inverted_residual.1} parent=5 // pred_fallthru
      _
    %p1224 = scmp.le.s32.totalorder 2, %s13
    // Predicated region
    $region67: #{inverted_residual.1} parent=5 // pred_check
      %p1225 = pneg %p1224
    $region68: #{inverted_residual.1} parent=5 // pred_check_branch
      %1227 = sbr.rel (%p1225) target = $region70
    $region69: #{inverted_residual.1} parent=5 // pred_region
      %s1228 = ssub.s32 %s13, 2
      // Predicated region
      $region71: #{inverted_residual.1} parent=69 // pred_check
        %p1229 = pneg %p194
      $region72: #{inverted_residual.1} parent=69 // pred_check_branch
        %1231 = sbr.rel (%p1229) target = $region74
      $region73: #{inverted_residual.1} parent=69 // pred_region
        %p1232 = scmp.lt.s32.totalorder %s19, 1
        %s1233 = scalar_select %p1232, %s19, 1
        %s1234 = smul.addr %s1233, 32
        %s1235 = smul.addr %s1234, 8
        %s1236 = scalar_lea.vmem %s7, %s1235
      $region74: #{inverted_residual.1} parent=69 // pred_fallthru
        _
    $region70: #{inverted_residual.1} parent=5 // pred_fallthru
      _
  $region6: #{inverted_residual.1} parent=0 // loop_footer
    %s17 = sadd.s32 1, %s13
  $region7: #{inverted_residual.1} parent=0 // loop_footer_branch
    %12 = sbr.rel target = $region3
  $region8: #{inverted_residual.1} parent=0 // loop_exit
    _

</llo_original>
